<compile_context>
chip_gen: v7x
topology: tpu7x:2x2x1
jax: 0.10.0
libtpu: 0.0.40
codegen_flags: <defaults>
</compile_context>

<pallas_src>
import math
import functools

import jax
import jax.numpy as jnp
from jax import lax
from jax.experimental import pallas as pl
from jax.experimental.pallas import tpu as pltpu


# ---------------------------------------------------------------------------
# Kernel 1a (default path): per-batch mean correlation, MXU formulation.
#   mean_value[b, tau] = (1/HE) * sum_t sum_he q[b,(t+tau)%L,he] * k[b,t,he]
# ---------------------------------------------------------------------------
def _corr_mean_kernel(q_ref, k_ref, mv_ref, *, L, HE):
    q = q_ref[0]                                   # (L, HE) bf16
    k = k_ref[0]                                   # (L, HE) bf16
    # G[t, s] = sum_he k[t, he] * q[s, he] -- one MXU matmul, f32 accumulate.
    g = lax.dot_general(k, q,
                        dimension_numbers=(((1,), (1,)), ((), ())),
                        preferred_element_type=jnp.float32)       # (L, L) f32
    # Circular diagonal extraction R[t, j] = G[t, (j + t) % L] via a log2(L)
    # barrel shifter: each step is one static XLU lane rotate + one select
    # keyed off a single bit of the (L, 1) row index (broadcast over lanes).
    row = lax.broadcasted_iota(jnp.int32, (L, 1), 0)              # (L, 1)
    r = g
    shift, bit = 1, 0
    while shift < L:
        rolled = pltpu.roll(r, shift=L - shift, axis=1)           # == jnp.roll(r, -shift, axis=1)
        take = ((row >> bit) & 1) == 1                            # (L, 1) bool
        r = jnp.where(take, rolled, r)
        shift *= 2
        bit += 1
    # Sum over t (one sublane reduce) and average over heads*channels.
    mv_ref[0] = jnp.sum(r, axis=0, keepdims=True) * (1.0 / HE)    # (1, L)


def _corr_mean_pallas(q_le, k_le):
    B, L, HE = q_le.shape
    kern = functools.partial(_corr_mean_kernel, L=L, HE=HE)
    mv = pl.pallas_call(
        kern,
        out_shape=jax.ShapeDtypeStruct((B, 1, L), jnp.float32),
        grid=(B,),
        in_specs=[pl.BlockSpec((1, L, HE), lambda b: (b, 0, 0)),
                  pl.BlockSpec((1, L, HE), lambda b: (b, 0, 0))],
        out_specs=pl.BlockSpec((1, 1, L), lambda b: (b, 0, 0)),
        compiler_params=pltpu.CompilerParams(dimension_semantics=("parallel",)),
    )(q_le, k_le)
    return mv[:, 0, :]                             # (B, L)


# ---------------------------------------------------------------------------
# Kernel 1b (only when output_attention=True): full correlation, lane-dense.
#   corr[b, tau, he] = sum_t q[b,(t+tau)%L,he] * k[b,t,he]
# Incremental circular shift of q via a static sublane roll carried through the
# fori_loop; accumulator is loop-carried and the output is stored once.
# ---------------------------------------------------------------------------
def _corr_full_kernel(q_ref, k_ref, corr_ref, *, L):
    q = q_ref[0]                                   # (L, HEp) f32

    def body(t, carry):
        acc, q_rot = carry                         # q_rot[tau] = q[(tau + t) % L]
        k_row = k_ref[0, pl.ds(t, 1), :]           # (1, HEp)
        acc = acc + q_rot * k_row                  # lane-dense VPU FMA (in vregs/VMEM)
        q_rot = pltpu.roll(q_rot, shift=L - 1, axis=0)   # == jnp.roll(q_rot, -1, axis=0)
        return acc, q_rot

    acc, _ = lax.fori_loop(0, L, body, (jnp.zeros_like(q), q), unroll=8)
    corr_ref[0] = acc                              # single lane-dense store


def _corr_full_pallas(q_le, k_le):
    B, L, HE = q_le.shape
    # Pad the lane dim to a multiple of 128 -> unmasked (lane-dense) stores.
    HEp = ((HE + 127) // 128) * 128
    if HEp != HE:
        pad = jnp.zeros((B, L, HEp - HE), q_le.dtype)
        q_p = jnp.concatenate([q_le, pad], axis=-1)
        k_p = jnp.concatenate([k_le, pad], axis=-1)
    else:
        q_p, k_p = q_le, k_le
    kern = functools.partial(_corr_full_kernel, L=L)
    out = pl.pallas_call(
        kern,
        out_shape=jax.ShapeDtypeStruct((B, L, HEp), jnp.float32),
        grid=(B,),
        in_specs=[pl.BlockSpec((1, L, HEp), lambda b: (b, 0, 0)),
                  pl.BlockSpec((1, L, HEp), lambda b: (b, 0, 0))],
        out_specs=pl.BlockSpec((1, L, HEp), lambda b: (b, 0, 0)),
        compiler_params=pltpu.CompilerParams(dimension_semantics=("parallel",)),
    )(q_p, k_p)
    return out[:, :, :HE]


# ---------------------------------------------------------------------------
# Kernel 2: time-delay aggregation (training variant), native (B, L, H*D)
# layout (L on sublanes, H*D on lanes -> lane-dense output stores).
#   out[b, l, :] = sum_i w[b, i] * v[b, (l + delay_i) % L, :]
# Delays arrive via scalar prefetch; the top_k terms accumulate in a
# loop-carried value and the output block is stored exactly once.
# ---------------------------------------------------------------------------
def _agg_kernel(idx_ref, w_ref, v_ref, o_ref, v2, *, L, top_k):
    b = pl.program_id(0)
    v = v_ref[0]                                   # (L, hd_tile) f32
    # In-VMEM doubling so the circular shift is one contiguous dynamic read.
    v2[pl.ds(0, L), :] = v
    v2[pl.ds(L, L), :] = v

    def body(i, acc):
        d = idx_ref[i]                             # SMEM scalar (delay)
        w = w_ref[b, i]                            # SMEM scalar (softmax weight)
        return acc + w * v2[pl.ds(d, L), :]        # circular shift + FMA

    acc = lax.fori_loop(0, top_k, body, jnp.zeros_like(v), unroll=True)
    o_ref[0] = acc                                 # single lane-dense store


def _pick_hd_tile(L, HD):
    """Largest multiple-of-128 divisor of HD whose per-step footprint
    (double-buffered in + out blocks + (2L, tile) scratch, f32) stays under a
    conservative budget that fits every generation's scoped VMEM default."""
    if HD % 128 != 0:
        return HD
    budget = 12 * 1024 * 1024
    best, t = 128, 128
    while t <= HD:
        if HD % t == 0 and 6 * L * t * 4 <= budget:
            best = t
        t += 128
    return best


def _agg_pallas(index, weights, v_flat, top_k):
    B, L, HD = v_flat.shape
    hd_tile = _pick_hd_tile(L, HD)
    grid = (B, HD // hd_tile)
    kern = functools.partial(_agg_kernel, L=L, top_k=top_k)
    return pl.pallas_call(
        kern,
        out_shape=jax.ShapeDtypeStruct((B, L, HD), jnp.float32),
        grid_spec=pltpu.PrefetchScalarGridSpec(
            num_scalar_prefetch=1,                 # delays: prefetched once into SMEM
            grid=grid,
            in_specs=[pl.BlockSpec(memory_space=pltpu.MemorySpace.SMEM),   # weights (B, top_k)
                      pl.BlockSpec((1, L, hd_tile), lambda b, j, idx: (b, 0, j))],
            out_specs=pl.BlockSpec((1, L, hd_tile), lambda b, j, idx: (b, 0, j)),
            scratch_shapes=[pltpu.VMEM((2 * L, hd_tile), jnp.float32)]),
        compiler_params=pltpu.CompilerParams(
            dimension_semantics=("parallel", "parallel")),
    )(index, weights, v_flat)


# ---------------------------------------------------------------------------
# Full forward (glue in plain JAX: reshapes, top-k, softmax -- all tiny).
# ---------------------------------------------------------------------------
def autocorrelation_forward(queries, keys, values, attn_mask=None, factor=1,
                            output_attention=False):
    B, L, H, E = queries.shape
    _, S, _, D = values.shape
    if L > S:
        values = jnp.concatenate(
            [values, jnp.zeros((B, L - S, H, D), values.dtype)], axis=1)
        keys = jnp.concatenate(
            [keys, jnp.zeros((B, L - S, H, E), keys.dtype)], axis=1)
    else:
        values = values[:, :L]
        keys = keys[:, :L]

    # Pure reshapes (no transposes): (B, L, H, E) -> (B, L, H*E).
    q_flat = queries.reshape(B, L, H * E)
    k_flat = keys.reshape(B, L, H * E)

    if output_attention:
        corr_le = _corr_full_pallas(q_flat.astype(jnp.float32),
                                    k_flat.astype(jnp.float32))    # (B, L, H*E)
        mean_value = jnp.mean(corr_le, axis=-1)                    # (B, L)
    else:
        corr_le = None
        # bf16 MXU inputs (native on v6e/v7x), f32 accumulation in the kernel.
        mean_value = _corr_mean_pallas(q_flat.astype(jnp.bfloat16),
                                       k_flat.astype(jnp.bfloat16))  # (B, L)

    # top_k delay selection (shared across the batch, as in the training path).
    top_k = max(int(factor * math.log(L)), 1)      # clamp: torch degenerates for L<=2
    _, index = lax.top_k(jnp.mean(mean_value, axis=0), top_k)     # (top_k,)
    weights = jnp.take(mean_value, index, axis=-1)                # (B, top_k)
    tmp_corr = jax.nn.softmax(weights, axis=-1)                   # (B, top_k)

    # Values stay in native (B, L, H*D) layout; output comes back the same way.
    v_flat = values.reshape(B, L, H * D).astype(jnp.float32)
    agg = _agg_pallas(index.astype(jnp.int32),
                      tmp_corr.astype(jnp.float32),
                      v_flat, top_k)                              # (B, L, H*D)
    V = agg.reshape(B, L, H, D)

    if output_attention:
        # torch returns corr.permute(0, 3, 1, 2) == (B, L, H, E)
        return V, corr_le.reshape(B, L, H, E)
    return V, None


# ---------------------------------------------------------------------------
# Pure-JAX (FFT) reference, mirroring the PyTorch code path, for verification.
# ---------------------------------------------------------------------------
def reference_forward(queries, keys, values, factor=1):
    B, L, H, E = queries.shape
    _, S, _, D = values.shape
    if L > S:
        values = jnp.concatenate(
            [values, jnp.zeros((B, L - S, H, D), values.dtype)], axis=1)
        keys = jnp.concatenate(
            [keys, jnp.zeros((B, L - S, H, E), keys.dtype)], axis=1)
    else:
        values = values[:, :L]
        keys = keys[:, :L]
    q = jnp.transpose(queries, (0, 2, 3, 1))
    k = jnp.transpose(keys, (0, 2, 3, 1))
    corr = jnp.fft.irfft(jnp.fft.rfft(q, axis=-1) * jnp.conj(jnp.fft.rfft(k, axis=-1)),
                         n=L, axis=-1)
    v = jnp.transpose(values, (0, 2, 3, 1))             # (B, H, D, L)
    top_k = max(int(factor * math.log(L)), 1)
    mean_value = jnp.mean(jnp.mean(corr, axis=1), axis=1)
    _, index = lax.top_k(jnp.mean(mean_value, axis=0), top_k)
    weights = jnp.take(mean_value, index, axis=-1)
    tmp_corr = jax.nn.softmax(weights, axis=-1)
    agg = jnp.zeros_like(v, dtype=jnp.float32)
    for i in range(top_k):
        pattern = jnp.roll(v, -index[i], axis=-1)
        agg = agg + pattern * tmp_corr[:, i][:, None, None, None]
    return jnp.transpose(agg, (0, 3, 1, 2))             # (B, L, H, D)


if __name__ == "__main__":
    key = jax.random.PRNGKey(0)
    # Small but TPU-friendly shapes: L = 128 (lane-aligned), H*D = 128.
    B, L, H, E, D = 2, 128, 4, 8, 32
    kq, kk, kv = jax.random.split(key, 3)
    # q/k are quantized to bf16-representable values so the kernel's bf16 MXU
    # cast is exact and the f32 FFT reference comparison stays tight.
    queries = jax.random.normal(kq, (B, L, H, E), jnp.float32)
    queries = queries.astype(jnp.bfloat16).astype(jnp.float32)
    keys = jax.random.normal(kk, (B, L, H, E), jnp.float32)
    keys = keys.astype(jnp.bfloat16).astype(jnp.float32)
    values = jax.random.normal(kv, (B, L, H, D), jnp.float32)

    V, attn = autocorrelation_forward(queries, keys, values, attn_mask=None)
    V = jax.block_until_ready(V)

    V_ref = reference_forward(queries, keys, values)
    assert V.shape == (B, L, H, D)
    assert jnp.allclose(V, V_ref, atol=2e-3, rtol=2e-3), "mismatch vs FFT reference"
    print("KERNEL_OK")
</pallas_src>

<mosaic_0001>
module attributes {stable_mosaic.version = 11 : i64} {
  func.func @_corr_mean_kernel(%arg0: i32, %arg1: memref<1x128x32xbf16, #tpu.memory_space<vmem>>, %arg2: memref<1x128x32xbf16, #tpu.memory_space<vmem>>, %arg3: memref<1x1x128xf32, #tpu.memory_space<vmem>>) attributes {dimension_semantics = [#tpu.dimension_semantics<parallel>], iteration_bounds = array<i64: 2>, scalar_prefetch = 0 : i64, scratch_operands = 0 : i64, tpu.core_type = #tpu.core_type<tc>, window_params = [{transform_indices = @transform_0, window_bounds = array<i64: 1, 128, 32>}, {transform_indices = @transform_1, window_bounds = array<i64: 1, 128, 32>}, {transform_indices = @transform_2, window_bounds = array<i64: 1, 1, 128>}]} {
    %c0 = arith.constant 0 : index
    %c0_0 = arith.constant 0 : index
    %c0_1 = arith.constant 0 : index
    %0 = vector.load %arg1[%c0, %c0_0, %c0_1] : memref<1x128x32xbf16, #tpu.memory_space<vmem>>, vector<1x128x32xbf16>
    %1 = vector.shape_cast %0 : vector<1x128x32xbf16> to vector<128x32xbf16>
    %c0_2 = arith.constant 0 : index
    %c0_3 = arith.constant 0 : index
    %c0_4 = arith.constant 0 : index
    %2 = vector.load %arg2[%c0_2, %c0_3, %c0_4] : memref<1x128x32xbf16, #tpu.memory_space<vmem>>, vector<1x128x32xbf16>
    %3 = vector.shape_cast %2 : vector<1x128x32xbf16> to vector<128x32xbf16>
    %cst = arith.constant dense<0.000000e+00> : vector<128x128xf32>
    %4 = tpu.matmul %3, %1, %cst {dimension_numbers = #tpu.dot_dimension_numbers<[1], [1], [0], [0], [0, 0, 1, 0], [], []>} : vector<128x32xbf16>, vector<128x32xbf16>, vector<128x128xf32> -> vector<128x128xf32>
    %5 = tpu.iota {dimensions = array<i32: 0>} : vector<128x1xi32>
    %c127_i32 = arith.constant 127 : i32
    %6 = tpu.dynamic_rotate %4 by %c127_i32 dim 1 : vector<128x128xf32>, i32 -> vector<128x128xf32>
    %c0_i32 = arith.constant 0 : i32
    %7 = vector.broadcast %c0_i32 : i32 to vector<128x1xi32>
    %8 = arith.shrsi %5, %7 : vector<128x1xi32>
    %c1_i32 = arith.constant 1 : i32
    %9 = vector.broadcast %c1_i32 : i32 to vector<128x1xi32>
    %10 = arith.andi %8, %9 : vector<128x1xi32>
    %c1_i32_5 = arith.constant 1 : i32
    %11 = vector.broadcast %c1_i32_5 : i32 to vector<128x1xi32>
    %12 = arith.cmpi eq, %10, %11 : vector<128x1xi32>
    %13 = vector.shape_cast %12 : vector<128x1xi1> to vector<128x1xi1>
    %14 = vector.broadcast %13 : vector<128x1xi1> to vector<128x128xi1>
    %15 = arith.select %14, %6, %4 : vector<128x128xi1>, vector<128x128xf32>
    %c126_i32 = arith.constant 126 : i32
    %16 = tpu.dynamic_rotate %15 by %c126_i32 dim 1 : vector<128x128xf32>, i32 -> vector<128x128xf32>
    %c1_i32_6 = arith.constant 1 : i32
    %17 = vector.broadcast %c1_i32_6 : i32 to vector<128x1xi32>
    %18 = arith.shrsi %5, %17 : vector<128x1xi32>
    %c1_i32_7 = arith.constant 1 : i32
    %19 = vector.broadcast %c1_i32_7 : i32 to vector<128x1xi32>
    %20 = arith.andi %18, %19 : vector<128x1xi32>
    %c1_i32_8 = arith.constant 1 : i32
    %21 = vector.broadcast %c1_i32_8 : i32 to vector<128x1xi32>
    %22 = arith.cmpi eq, %20, %21 : vector<128x1xi32>
    %23 = vector.shape_cast %22 : vector<128x1xi1> to vector<128x1xi1>
    %24 = vector.broadcast %23 : vector<128x1xi1> to vector<128x128xi1>
    %25 = arith.select %24, %16, %15 : vector<128x128xi1>, vector<128x128xf32>
    %c124_i32 = arith.constant 124 : i32
    %26 = tpu.dynamic_rotate %25 by %c124_i32 dim 1 : vector<128x128xf32>, i32 -> vector<128x128xf32>
    %c2_i32 = arith.constant 2 : i32
    %27 = vector.broadcast %c2_i32 : i32 to vector<128x1xi32>
    %28 = arith.shrsi %5, %27 : vector<128x1xi32>
    %c1_i32_9 = arith.constant 1 : i32
    %29 = vector.broadcast %c1_i32_9 : i32 to vector<128x1xi32>
    %30 = arith.andi %28, %29 : vector<128x1xi32>
    %c1_i32_10 = arith.constant 1 : i32
    %31 = vector.broadcast %c1_i32_10 : i32 to vector<128x1xi32>
    %32 = arith.cmpi eq, %30, %31 : vector<128x1xi32>
    %33 = vector.shape_cast %32 : vector<128x1xi1> to vector<128x1xi1>
    %34 = vector.broadcast %33 : vector<128x1xi1> to vector<128x128xi1>
    %35 = arith.select %34, %26, %25 : vector<128x128xi1>, vector<128x128xf32>
    %c120_i32 = arith.constant 120 : i32
    %36 = tpu.dynamic_rotate %35 by %c120_i32 dim 1 : vector<128x128xf32>, i32 -> vector<128x128xf32>
    %c3_i32 = arith.constant 3 : i32
    %37 = vector.broadcast %c3_i32 : i32 to vector<128x1xi32>
    %38 = arith.shrsi %5, %37 : vector<128x1xi32>
    %c1_i32_11 = arith.constant 1 : i32
    %39 = vector.broadcast %c1_i32_11 : i32 to vector<128x1xi32>
    %40 = arith.andi %38, %39 : vector<128x1xi32>
    %c1_i32_12 = arith.constant 1 : i32
    %41 = vector.broadcast %c1_i32_12 : i32 to vector<128x1xi32>
    %42 = arith.cmpi eq, %40, %41 : vector<128x1xi32>
    %43 = vector.shape_cast %42 : vector<128x1xi1> to vector<128x1xi1>
    %44 = vector.broadcast %43 : vector<128x1xi1> to vector<128x128xi1>
    %45 = arith.select %44, %36, %35 : vector<128x128xi1>, vector<128x128xf32>
    %c112_i32 = arith.constant 112 : i32
    %46 = tpu.dynamic_rotate %45 by %c112_i32 dim 1 : vector<128x128xf32>, i32 -> vector<128x128xf32>
    %c4_i32 = arith.constant 4 : i32
    %47 = vector.broadcast %c4_i32 : i32 to vector<128x1xi32>
    %48 = arith.shrsi %5, %47 : vector<128x1xi32>
    %c1_i32_13 = arith.constant 1 : i32
    %49 = vector.broadcast %c1_i32_13 : i32 to vector<128x1xi32>
    %50 = arith.andi %48, %49 : vector<128x1xi32>
    %c1_i32_14 = arith.constant 1 : i32
    %51 = vector.broadcast %c1_i32_14 : i32 to vector<128x1xi32>
    %52 = arith.cmpi eq, %50, %51 : vector<128x1xi32>
    %53 = vector.shape_cast %52 : vector<128x1xi1> to vector<128x1xi1>
    %54 = vector.broadcast %53 : vector<128x1xi1> to vector<128x128xi1>
    %55 = arith.select %54, %46, %45 : vector<128x128xi1>, vector<128x128xf32>
    %c96_i32 = arith.constant 96 : i32
    %56 = tpu.dynamic_rotate %55 by %c96_i32 dim 1 : vector<128x128xf32>, i32 -> vector<128x128xf32>
    %c5_i32 = arith.constant 5 : i32
    %57 = vector.broadcast %c5_i32 : i32 to vector<128x1xi32>
    %58 = arith.shrsi %5, %57 : vector<128x1xi32>
    %c1_i32_15 = arith.constant 1 : i32
    %59 = vector.broadcast %c1_i32_15 : i32 to vector<128x1xi32>
    %60 = arith.andi %58, %59 : vector<128x1xi32>
    %c1_i32_16 = arith.constant 1 : i32
    %61 = vector.broadcast %c1_i32_16 : i32 to vector<128x1xi32>
    %62 = arith.cmpi eq, %60, %61 : vector<128x1xi32>
    %63 = vector.shape_cast %62 : vector<128x1xi1> to vector<128x1xi1>
    %64 = vector.broadcast %63 : vector<128x1xi1> to vector<128x128xi1>
    %65 = arith.select %64, %56, %55 : vector<128x128xi1>, vector<128x128xf32>
    %c64_i32 = arith.constant 64 : i32
    %66 = tpu.dynamic_rotate %65 by %c64_i32 dim 1 : vector<128x128xf32>, i32 -> vector<128x128xf32>
    %c6_i32 = arith.constant 6 : i32
    %67 = vector.broadcast %c6_i32 : i32 to vector<128x1xi32>
    %68 = arith.shrsi %5, %67 : vector<128x1xi32>
    %c1_i32_17 = arith.constant 1 : i32
    %69 = vector.broadcast %c1_i32_17 : i32 to vector<128x1xi32>
    %70 = arith.andi %68, %69 : vector<128x1xi32>
    %c1_i32_18 = arith.constant 1 : i32
    %71 = vector.broadcast %c1_i32_18 : i32 to vector<128x1xi32>
    %72 = arith.cmpi eq, %70, %71 : vector<128x1xi32>
    %73 = vector.shape_cast %72 : vector<128x1xi1> to vector<128x1xi1>
    %74 = vector.broadcast %73 : vector<128x1xi1> to vector<128x128xi1>
    %75 = arith.select %74, %66, %65 : vector<128x128xi1>, vector<128x128xf32>
    %cst_19 = arith.constant dense<0.000000e+00> : vector<128xf32>
    %76 = vector.multi_reduction <add>, %75, %cst_19 [0] : vector<128x128xf32> to vector<128xf32>
    %77 = vector.shape_cast %76 : vector<128xf32> to vector<1x128xf32>
    %cst_20 = arith.constant 3.125000e-02 : f32
    %78 = vector.broadcast %cst_20 : f32 to vector<1x128xf32>
    %79 = arith.mulf %77, %78 : vector<1x128xf32>
    %c0_21 = arith.constant 0 : index
    %c0_22 = arith.constant 0 : index
    %c0_23 = arith.constant 0 : index
    %80 = vector.load %arg3[%c0_21, %c0_22, %c0_23] : memref<1x1x128xf32, #tpu.memory_space<vmem>>, vector<1x1x128xf32>
    %81 = vector.shape_cast %80 : vector<1x1x128xf32> to vector<1x128xf32>
    %82 = vector.shape_cast %79 : vector<1x128xf32> to vector<1x1x128xf32>
    tpu.vector_store %arg3[%c0_21, %c0_22, %c0_23], %82 {strides = array<i32>} : memref<1x1x128xf32, #tpu.memory_space<vmem>>, vector<1x1x128xf32>,
    return
  }
  func.func @transform_0(%arg0: i32) -> (i32, i32, i32) {
    %c0_i32 = arith.constant 0 : i32
    %c0_i32_0 = arith.constant 0 : i32
    %c0_i32_1 = arith.constant 0 : i32
    return %arg0, %c0_i32, %c0_i32_0 : i32, i32, i32
  }
  func.func @transform_1(%arg0: i32) -> (i32, i32, i32) {
    %c0_i32 = arith.constant 0 : i32
    %c0_i32_0 = arith.constant 0 : i32
    %c0_i32_1 = arith.constant 0 : i32
    return %arg0, %c0_i32, %c0_i32_0 : i32, i32, i32
  }
  func.func @transform_2(%arg0: i32) -> (i32, i32, i32) {
    %c0_i32 = arith.constant 0 : i32
    %c0_i32_0 = arith.constant 0 : i32
    %c0_i32_1 = arith.constant 0 : i32
    return %arg0, %c0_i32, %c0_i32_0 : i32, i32, i32
  }
}

</mosaic_0001>

<llo_original>
// kernel: tpu_custom_call.1
$region0: #{tpu_custom_call.1}
  #allocation0 [shape = 'u32[]', space=smem, size = 0x4, offset = 0x4, fixed_abs, tag = 'smem constant byte address 0x4 - core index']
  #allocation1 [shape = 'u32[144,128]{1,0:T(1,128)}', space=vmem, size = 0x12000, scoped, tag = 'internal scratch']
  %s0 = inlined_call_operand.vmem [shape: bf16[2,128,32], index: 0, kind: input, shape index: {}]
  %s1 = inlined_call_operand.vmem [shape: bf16[2,128,32], index: 1, kind: input, shape index: {}]
  %s2 = inlined_call_operand.hbm [shape: f32[2,1,128], index: 2, kind: output, shape index: {}]
  %s3 = sld [smem:[#allocation0]]
  $region41: #{tpu_custom_call.1} parent=0
    _
  %s5 = ssub.s32 1, %s3
  %s6 = scalar_select 0, %s5, %s3
  $region1: #{tpu_custom_call.1} parent=0
    #allocation2 [shape = 'u8[1024]{0}', space=vmem, size = 0x400, scoped, tag = 'output window, operand 0']
    #allocation3 [shape = 's32[2]{0}', space=sflag, size = 0x8, scoped, tag = 'scoped memory for tpu_custom_call.1']
    %7 = vsyncpa [#allocation3], 0
    %s8 = scalar_lea.sflag [#allocation3], 1
    %9 = vsyncpa %s8, 0
    loop: start=0, step=1, limit=4
    $region2: #{tpu_custom_call.1} parent=1 // loop_pre_header
      _
    $region3: #{tpu_custom_call.1} parent=1 // loop_header
      %s11 = sphi 0, %s15
      %p12 = scmp.ge.s32.totalorder %s11, 4
      %s21 = sphi 0, %s23
      %s24 = sphi 0, %s21
      %s25 = sphi 0, %s24
      %s41 = sphi 0, %s25
      %s47 = sphi 0, %s49
      %s50 = sphi 0, %s47
      %s51 = sphi 0, %s50
      %s67 = sphi 0, %s51
      %s73 = sphi 0, %s75
      %s76 = sphi 0, %s73
      %s77 = sphi 0, %s76
      %s93 = sphi 0, %s77
    $region4: #{tpu_custom_call.1} parent=1 // loop_header_branch
      %14 = sbr.rel (%p12) target = $region8
    $region5: #{tpu_custom_call.1} parent=1 // loop_body
      %s16 = ssub.s32 %s11, 1
      %s17 = ssub.s32 %s11, 2
      %s18 = sadd.s32 %s11, 1
      %s19 = ssub.s32 %s11, %s18
      %p20 = scmp.eq.s32.totalorder %s19, 0
      %s22 = sadd.s32 %s21, 1
      %s23 = scalar_select %p20, %s21, %s22
      %p26 = pneg %p20
      %p27 = scmp.eq.s32.totalorder %s11, 1
      %p28 = por %p26, %p27
      %p29 = scmp.ne.s32.totalorder %s21, %s24
      %p30 = scmp.eq.s32.totalorder %s11, 0
      %p31 = por %p29, %p30
      %p32 = scmp.ne.s32.totalorder %s21, %s24
      %p33 = scmp.eq.s32.totalorder %s16, 1
      %p34 = por %p32, %p33
      %p35 = scmp.ne.s32.totalorder %s24, %s25
      %p36 = scmp.eq.s32.totalorder %s16, 0
      %p37 = por %p35, %p36
      %p38 = scmp.ne.s32.totalorder %s24, %s25
      %p39 = scmp.eq.s32.totalorder %s17, 1
      %p40 = por %p38, %p39
      %p42 = scmp.ne.s32.totalorder %s25, %s41
      %p43 = scmp.eq.s32.totalorder %s17, 0
      %p44 = por %p42, %p43
      %s45 = ssub.s32 %s11, %s18
      %p46 = scmp.eq.s32.totalorder %s45, 0
      %s48 = sadd.s32 %s47, 1
      %s49 = scalar_select %p46, %s47, %s48
      %p52 = pneg %p46
      %p53 = scmp.eq.s32.totalorder %s11, 1
      %p54 = por %p52, %p53
      %p55 = scmp.ne.s32.totalorder %s47, %s50
      %p56 = scmp.eq.s32.totalorder %s11, 0
      %p57 = por %p55, %p56
      %p58 = scmp.ne.s32.totalorder %s47, %s50
      %p59 = scmp.eq.s32.totalorder %s16, 1
      %p60 = por %p58, %p59
      %p61 = scmp.ne.s32.totalorder %s50, %s51
      %p62 = scmp.eq.s32.totalorder %s16, 0
      %p63 = por %p61, %p62
      %p64 = scmp.ne.s32.totalorder %s50, %s51
      %p65 = scmp.eq.s32.totalorder %s17, 1
      %p66 = por %p64, %p65
      %p68 = scmp.ne.s32.totalorder %s51, %s67
      %p69 = scmp.eq.s32.totalorder %s17, 0
      %p70 = por %p68, %p69
      %s71 = ssub.s32 %s11, %s18
      %p72 = scmp.eq.s32.totalorder %s71, 0
      %s74 = sadd.s32 %s73, 1
      %s75 = scalar_select %p72, %s73, %s74
      %p78 = pneg %p72
      %p79 = scmp.eq.s32.totalorder %s11, 1
      %p80 = por %p78, %p79
      %p81 = scmp.ne.s32.totalorder %s73, %s76
      %p82 = scmp.eq.s32.totalorder %s11, 0
      %p83 = por %p81, %p82
      %p84 = scmp.ne.s32.totalorder %s73, %s76
      %p85 = scmp.eq.s32.totalorder %s16, 1
      %p86 = por %p84, %p85
      %p87 = scmp.ne.s32.totalorder %s76, %s77
      %p88 = scmp.eq.s32.totalorder %s16, 0
      %p89 = por %p87, %p88
      %p90 = scmp.ne.s32.totalorder %s76, %s77
      %p91 = scmp.eq.s32.totalorder %s17, 1
      %p92 = por %p90, %p91
      %p94 = scmp.ne.s32.totalorder %s77, %s93
      %p95 = scmp.eq.s32.totalorder %s17, 0
      %p96 = por %p94, %p95
      %p97 = scmp.le.s32.totalorder 1, %s11
      %p98 = scmp.lt.s32.totalorder %s11, 3
      %p99 = pnand %p97, %p98
      %p100 = pneg %p99
      // Predicated region
      $region9: #{tpu_custom_call.1} parent=5 // pred_check
        _
      $region10: #{tpu_custom_call.1} parent=5 // pred_check_branch
        %102 = sbr.rel (%p99) target = $region12
      $region11: #{tpu_custom_call.1} parent=5 // pred_region
        %s103 = ssub.s32 %s11, 1
      $region12: #{tpu_custom_call.1} parent=5 // pred_fallthru
        _
      %p104 = scmp.lt.s32.totalorder %s11, 2
      // Predicated region
      $region13: #{tpu_custom_call.1} parent=5 // pred_check
        %p105 = pneg %p104
      $region14: #{tpu_custom_call.1} parent=5 // pred_check_branch
        %107 = sbr.rel (%p105) target = $region16
      $region15: #{tpu_custom_call.1} parent=5 // pred_region
        // Predicated region
        $region17: #{tpu_custom_call.1} parent=15 // pred_check
          %p108 = pneg %p31
        $region18: #{tpu_custom_call.1} parent=15 // pred_check_branch
          %110 = sbr.rel (%p108) target = $region20
        $region19: #{tpu_custom_call.1} parent=15 // pred_region
          %p111 = scmp.lt.s32.totalorder %s11, 1
          %s112 = scalar_select %p111, %s11, 1
          %s113 = smul.addr %s112, 16
          %s114 = smul.addr %s113, 4
          %s115 = scalar_lea.vmem %s0, %s114
        $region20: #{tpu_custom_call.1} parent=15 // pred_fallthru
          _
        // Predicated region
        $region21: #{tpu_custom_call.1} parent=15 // pred_check
          %p116 = pneg %p57
        $region22: #{tpu_custom_call.1} parent=15 // pred_check_branch
          %118 = sbr.rel (%p116) target = $region24
        $region23: #{tpu_custom_call.1} parent=15 // pred_region
          %p119 = scmp.lt.s32.totalorder %s11, 1
          %s120 = scalar_select %p119, %s11, 1
          %s121 = smul.addr %s120, 16
          %s122 = smul.addr %s121, 4
          %s123 = scalar_lea.vmem %s1, %s122
        $region24: #{tpu_custom_call.1} parent=15 // pred_fallthru
          _
      $region16: #{tpu_custom_call.1} parent=5 // pred_fallthru
        _
      %p124 = scmp.le.s32.totalorder 1, %s11
      %p125 = scmp.lt.s32.totalorder %s11, 3
      %p126 = pnand %p124, %p125
      %p127 = pneg %p126
      // Predicated region
      $region25: #{tpu_custom_call.1} parent=5 // pred_check
        _
      $region26: #{tpu_custom_call.1} parent=5 // pred_check_branch
        %129 = sbr.rel (%p126) target = $region28
      $region27: #{tpu_custom_call.1} parent=5 // pred_region
        %s130 = ssub.s32 %s11, 1
        %p131 = scmp.lt.s32.totalorder %s16, 1
        %s132 = scalar_select %p131, %s16, 1
        %s133 = smul.addr %s132, 16
        %s134 = smul.addr %s133, 4
        %s135 = scalar_lea.vmem %s0, %s134
        %p136 = pneg %p37
        %p137 = pneg %p34
        %p138 = scmp.lt.s32.totalorder %s16, 1
        %s139 = scalar_select %p138, %s16, 1
        %s140 = smul.addr %s139, 16
        %s141 = smul.addr %s140, 4
        %s142 = scalar_lea.vmem %s1, %s141
        %p143 = pneg %p63
        %p144 = pneg %p60
        %p145 = pneg %p89
        %p146 = pneg %p86
        %s147 = sand.u32 %s76, 1
        %s148 = scalar_lea.sflag [#allocation3], %s147
        %s149 = sand.u32 %s76, 1
        %s150 = scalar_lea.vmem [#allocation2], %s149
        %p151 = scmp.lt.s32.totalorder %s16, 1
        %s152 = scalar_select %p151, %s16, 1
        %s153 = smul.addr %s152, 16
        %s154 = smul.addr %s153, 4
        %s155 = scalar_lea.vmem %s0, %s154
        %p156 = scmp.lt.s32.totalorder %s16, 1
        %s157 = scalar_select %p156, %s16, 1
        %s158 = smul.addr %s157, 16
        %s159 = smul.addr %s158, 4
        %s160 = scalar_lea.vmem %s1, %s159
        %v162 = vld [vmem:[%s155] sm:$0xf]
        %v163 = vld [vmem:[%s155 + $0x4] sm:$0xf]
        %v164 = vld [vmem:[%s155 + $0x8] sm:$0xf]
        %v165 = vld [vmem:[%s155 + $0xc] sm:$0xf]
        %v166 = vld [vmem:[%s155 + $0x10] sm:$0xf]
        %v167 = vld [vmem:[%s155 + $0x14] sm:$0xf]
        %v168 = vld [vmem:[%s155 + $0x18] sm:$0xf]
        %v169 = vld [vmem:[%s155 + $0x1c] sm:$0xf]
        %v170 = vld [vmem:[%s155 + $0x20] sm:$0xf]
        %v171 = vld [vmem:[%s155 + $0x24] sm:$0xf]
        %v172 = vld [vmem:[%s155 + $0x28] sm:$0xf]
        %v173 = vld [vmem:[%s155 + $0x2c] sm:$0xf]
        %v174 = vld [vmem:[%s155 + $0x30] sm:$0xf]
        %v175 = vld [vmem:[%s155 + $0x34] sm:$0xf]
        %v176 = vld [vmem:[%s155 + $0x38] sm:$0xf]
        %v177 = vld [vmem:[%s155 + $0x3c] sm:$0xf]
        %v178 = vld [vmem:[%s160] sm:$0xf]
        %v179 = vld [vmem:[%s160 + $0x4] sm:$0xf]
        %v180 = vld [vmem:[%s160 + $0x8] sm:$0xf]
        %v181 = vld [vmem:[%s160 + $0xc] sm:$0xf]
        %v182 = vld [vmem:[%s160 + $0x10] sm:$0xf]
        %v183 = vld [vmem:[%s160 + $0x14] sm:$0xf]
        %v184 = vld [vmem:[%s160 + $0x18] sm:$0xf]
        %v185 = vld [vmem:[%s160 + $0x1c] sm:$0xf]
        %v186 = vld [vmem:[%s160 + $0x20] sm:$0xf]
        %v187 = vld [vmem:[%s160 + $0x24] sm:$0xf]
        %v188 = vld [vmem:[%s160 + $0x28] sm:$0xf]
        %v189 = vld [vmem:[%s160 + $0x2c] sm:$0xf]
        %v190 = vld [vmem:[%s160 + $0x30] sm:$0xf]
        %v191 = vld [vmem:[%s160 + $0x34] sm:$0xf]
        %v192 = vld [vmem:[%s160 + $0x38] sm:$0xf]
        %v193 = vld [vmem:[%s160 + $0x3c] sm:$0xf]
        %v210 = vunpack.c.l.b16 %v178
        %v211 = vunpack.c.l.b16 %v179
        %v212 = vunpack.c.l.b16 %v180
        %v213 = vunpack.c.l.b16 %v181
        %v214 = vunpack.c.l.b16 %v182
        %v215 = vunpack.c.l.b16 %v183
        %v216 = vunpack.c.l.b16 %v184
        %v217 = vunpack.c.l.b16 %v185
        %v218 = vunpack.c.l.b16 %v186
        %v219 = vunpack.c.l.b16 %v187
        %v220 = vunpack.c.l.b16 %v188
        %v221 = vunpack.c.l.b16 %v189
        %v222 = vunpack.c.l.b16 %v190
        %v223 = vunpack.c.l.b16 %v191
        %v224 = vunpack.c.l.b16 %v192
        %v225 = vunpack.c.l.b16 %v193
        %v226 = vpack.c.b16 %v211, %v210
        %v227 = vpack.c.b16 %v213, %v212
        %v228 = vpack.c.b16 %v215, %v214
        %v229 = vpack.c.b16 %v217, %v216
        %v230 = vpack.c.b16 %v219, %v218
        %v231 = vpack.c.b16 %v221, %v220
        %v232 = vpack.c.b16 %v223, %v222
        %v233 = vpack.c.b16 %v225, %v224
        %v250 = vunpack.c.l.b16 %v162
        %v251 = vunpack.c.l.b16 %v163
        %v252 = vunpack.c.l.b16 %v164
        %v253 = vunpack.c.l.b16 %v165
        %v254 = vunpack.c.l.b16 %v166
        %v255 = vunpack.c.l.b16 %v167
        %v256 = vunpack.c.l.b16 %v168
        %v257 = vunpack.c.l.b16 %v169
        %v258 = vunpack.c.l.b16 %v170
        %v259 = vunpack.c.l.b16 %v171
        %v260 = vunpack.c.l.b16 %v172
        %v261 = vunpack.c.l.b16 %v173
        %v262 = vunpack.c.l.b16 %v174
        %v263 = vunpack.c.l.b16 %v175
        %v264 = vunpack.c.l.b16 %v176
        %v265 = vunpack.c.l.b16 %v177
        %v266 = vpack.c.b16 %v251, %v250
        %v267 = vpack.c.b16 %v253, %v252
        %v268 = vpack.c.b16 %v255, %v254
        %v269 = vpack.c.b16 %v257, %v256
        %v270 = vpack.c.b16 %v259, %v258
        %v271 = vpack.c.b16 %v261, %v260
        %v272 = vpack.c.b16 %v263, %v262
        %v273 = vpack.c.b16 %v265, %v264
        %vm274 = vcmask 261120
        %v276 = vsel %vm274, %v226, 0
        %v279 = vsel %vm274, %v227, 0
        %v282 = vsel %vm274, %v228, 0
        %v285 = vsel %vm274, %v229, 0
        %v288 = vsel %vm274, %v230, 0
        %v291 = vsel %vm274, %v231, 0
        %v294 = vsel %vm274, %v232, 0
        %v297 = vsel %vm274, %v233, 0
        %v300 = vsel %vm274, %v266, 0
        %v303 = vsel %vm274, %v267, 0
        %v306 = vsel %vm274, %v268, 0
        %v309 = vsel %vm274, %v269, 0
        %v312 = vsel %vm274, %v270, 0
        %v315 = vsel %vm274, %v271, 0
        %v318 = vsel %vm274, %v272, 0
        %v321 = vsel %vm274, %v273, 0
        %323 = vmatprep.subr.bf16.mxu0 0
        %324 = vmatpush1.bf16.xpose.msra.mxu0 %v300
        %325 = vmatprep.subr.bf16.mxu0 0
        %326 = vmatpush1.bf16.xpose.msra.mxu0 %v303
        %327 = vmatprep.subr.bf16.mxu0 0
        %328 = vmatpush1.bf16.xpose.msra.mxu0 %v306
        %329 = vmatprep.subr.bf16.mxu0 0
        %330 = vmatpush1.bf16.xpose.msra.mxu0 %v309
        %331 = vmatprep.subr.bf16.mxu0 0
        %332 = vmatpush1.bf16.xpose.msra.mxu0 %v312
        %333 = vmatprep.subr.bf16.mxu0 0
        %334 = vmatpush1.bf16.xpose.msra.mxu0 %v315
        %335 = vmatprep.subr.bf16.mxu0 0
        %336 = vmatpush1.bf16.xpose.msra.mxu0 %v318
        %337 = vmatprep.subr.bf16.mxu0 0
        %338 = vmatpush1.bf16.xpose.msra.mxu0 %v321
        %339 = vmatprep.subr.bf16.mxu0 0
        %340 = vmatpush1.bf16.xpose.msra.mxu0 0
        %341 = vmatprep.subr.bf16.mxu0 0
        %342 = vmatpush1.bf16.xpose.msra.mxu0 0
        %343 = vmatprep.subr.bf16.mxu0 0
        %344 = vmatpush1.bf16.xpose.msra.mxu0 0
        %345 = vmatprep.subr.bf16.mxu0 0
        %346 = vmatpush1.bf16.xpose.msra.mxu0 0
        %347 = vmatprep.subr.bf16.mxu0 0
        %348 = vmatpush1.bf16.xpose.msra.mxu0 0
        %349 = vmatprep.subr.bf16.mxu0 0
        %350 = vmatpush1.bf16.xpose.msra.mxu0 0
        %351 = vmatprep.subr.bf16.mxu0 0
        %352 = vmatpush1.bf16.xpose.msra.mxu0 0
        %353 = vmatprep.subr.bf16.mxu0 0
        %354 = vmatpush1.bf16.xpose.msra.mxu0 0
        %355 = vmatprep.mubr.bf16.mxu0 0
        %356 = vmatmul.mubr.bf16.gmra.mrb[0].mxu0 %v276
        %v357 = vpop.f32.mrb[0].mxu0
        %v358 = vadd.f32 0.0, %v357
        %v359 = vpop.f32.mrb[0].mxu0
        %v360 = vpop.f32.mrb[0].mxu0
        %v361 = vadd.f32 0.0, %v360
        %v362 = vpop.f32.mrb[0].mxu0
        %363 = vmatprep.mubr.bf16.mxu0 0
        %364 = vmatmul.mubr.bf16.gmra.mrb[0].mxu0 %v279
        %v365 = vpop.f32.mrb[0].mxu0
        %v366 = vadd.f32 0.0, %v365
        %v367 = vpop.f32.mrb[0].mxu0
        %v368 = vpop.f32.mrb[0].mxu0
        %v369 = vadd.f32 0.0, %v368
        %v370 = vpop.f32.mrb[0].mxu0
        %371 = vmatprep.mubr.bf16.mxu0 0
        %372 = vmatmul.mubr.bf16.gmra.mrb[0].mxu0 %v282
        %v373 = vpop.f32.mrb[0].mxu0
        %v374 = vadd.f32 0.0, %v373
        %v375 = vpop.f32.mrb[0].mxu0
        %v376 = vpop.f32.mrb[0].mxu0
        %v377 = vadd.f32 0.0, %v376
        %v378 = vpop.f32.mrb[0].mxu0
        %379 = vmatprep.mubr.bf16.mxu0 0
        %380 = vmatmul.mubr.bf16.gmra.mrb[0].mxu0 %v285
        %v381 = vpop.f32.mrb[0].mxu0
        %v382 = vadd.f32 0.0, %v381
        %v383 = vpop.f32.mrb[0].mxu0
        %v384 = vpop.f32.mrb[0].mxu0
        %v385 = vadd.f32 0.0, %v384
        %v386 = vpop.f32.mrb[0].mxu0
        %387 = vmatprep.mubr.bf16.mxu0 0
        %388 = vmatmul.mubr.bf16.gmra.mrb[0].mxu0 %v288
        %v389 = vpop.f32.mrb[0].mxu0
        %v390 = vadd.f32 0.0, %v389
        %v391 = vpop.f32.mrb[0].mxu0
        %v392 = vpop.f32.mrb[0].mxu0
        %v393 = vadd.f32 0.0, %v392
        %v394 = vpop.f32.mrb[0].mxu0
        %395 = vmatprep.mubr.bf16.mxu0 0
        %396 = vmatmul.mubr.bf16.gmra.mrb[0].mxu0 %v291
        %v397 = vpop.f32.mrb[0].mxu0
        %v398 = vadd.f32 0.0, %v397
        %v399 = vpop.f32.mrb[0].mxu0
        %v400 = vpop.f32.mrb[0].mxu0
        %v401 = vadd.f32 0.0, %v400
        %v402 = vpop.f32.mrb[0].mxu0
        %403 = vmatprep.mubr.bf16.mxu0 0
        %404 = vmatmul.mubr.bf16.gmra.mrb[0].mxu0 %v294
        %v405 = vpop.f32.mrb[0].mxu0
        %v406 = vadd.f32 0.0, %v405
        %v407 = vpop.f32.mrb[0].mxu0
        %v408 = vpop.f32.mrb[0].mxu0
        %v409 = vadd.f32 0.0, %v408
        %v410 = vpop.f32.mrb[0].mxu0
        %411 = vmatprep.mubr.bf16.mxu0 0
        %412 = vmatmul.mubr.bf16.gmra.mrb[0].mxu0 %v297
        %v413 = vpop.f32.mrb[0].mxu0
        %v414 = vadd.f32 0.0, %v413
        %v415 = vpop.f32.mrb[0].mxu0
        %v416 = vpop.f32.mrb[0].mxu0
        %v417 = vadd.f32 0.0, %v416
        %v418 = vpop.f32.mrb[0].mxu0
        %419 = vdwg.mxu0
        %v420 = vlaneseq
        %v421 = vshrl.u32 %v420, 7
        %v422 = vadd.s32 %v421, 8
        %v423 = vadd.s32 %v421, 16
        %v424 = vadd.s32 %v421, 24
        %v425 = vadd.s32 %v421, 32
        %v426 = vadd.s32 %v421, 40
        %v427 = vadd.s32 %v421, 48
        %v428 = vadd.s32 %v421, 56
        %v429 = vadd.s32 %v421, 64
        %v430 = vadd.s32 %v421, 72
        %v431 = vadd.s32 %v421, 80
        %v432 = vadd.s32 %v421, 88
        %v433 = vadd.s32 %v421, 96
        %v434 = vadd.s32 %v421, 104
        %v435 = vadd.s32 %v421, 112
        %v436 = vadd.s32 %v421, 120
        %437 = vrot.lane.b32.xlu0 %v358, 127
        %v438 = vpop.permute.xlu0 %437
        %439 = vrot.lane.b32.xlu0 %v361, 127
        %v440 = vpop.permute.xlu0 %439
        %441 = vrot.lane.b32.xlu0 %v366, 127
        %v442 = vpop.permute.xlu0 %441
        %443 = vrot.lane.b32.xlu0 %v369, 127
        %v444 = vpop.permute.xlu0 %443
        %445 = vrot.lane.b32.xlu0 %v374, 127
        %v446 = vpop.permute.xlu0 %445
        %447 = vrot.lane.b32.xlu0 %v377, 127
        %v448 = vpop.permute.xlu0 %447
        %449 = vrot.lane.b32.xlu0 %v382, 127
        %v450 = vpop.permute.xlu0 %449
        %451 = vrot.lane.b32.xlu0 %v385, 127
        %v452 = vpop.permute.xlu0 %451
        %453 = vrot.lane.b32.xlu0 %v390, 127
        %v454 = vpop.permute.xlu0 %453
        %455 = vrot.lane.b32.xlu0 %v393, 127
        %v456 = vpop.permute.xlu0 %455
        %457 = vrot.lane.b32.xlu0 %v398, 127
        %v458 = vpop.permute.xlu0 %457
        %459 = vrot.lane.b32.xlu0 %v401, 127
        %v460 = vpop.permute.xlu0 %459
        %461 = vrot.lane.b32.xlu0 %v406, 127
        %v462 = vpop.permute.xlu0 %461
        %463 = vrot.lane.b32.xlu0 %v409, 127
        %v464 = vpop.permute.xlu0 %463
        %465 = vrot.lane.b32.xlu0 %v414, 127
        %v466 = vpop.permute.xlu0 %465
        %467 = vrot.lane.b32.xlu0 %v417, 127
        %v468 = vpop.permute.xlu0 %467
        %v469 = vand.u32 %v421, 1
        %v470 = vand.u32 %v422, 1
        %v471 = vand.u32 %v423, 1
        %v472 = vand.u32 %v424, 1
        %v473 = vand.u32 %v425, 1
        %v474 = vand.u32 %v426, 1
        %v475 = vand.u32 %v427, 1
        %v476 = vand.u32 %v428, 1
        %v477 = vand.u32 %v429, 1
        %v478 = vand.u32 %v430, 1
        %v479 = vand.u32 %v431, 1
        %v480 = vand.u32 %v432, 1
        %v481 = vand.u32 %v433, 1
        %v482 = vand.u32 %v434, 1
        %v483 = vand.u32 %v435, 1
        %v484 = vand.u32 %v436, 1
        %vm485 = vcmp.eq.s32.totalorder %v469, 1
        %vm486 = vcmp.eq.s32.totalorder %v470, 1
        %vm487 = vcmp.eq.s32.totalorder %v471, 1
        %vm488 = vcmp.eq.s32.totalorder %v472, 1
        %vm489 = vcmp.eq.s32.totalorder %v473, 1
        %vm490 = vcmp.eq.s32.totalorder %v474, 1
        %vm491 = vcmp.eq.s32.totalorder %v475, 1
        %vm492 = vcmp.eq.s32.totalorder %v476, 1
        %vm493 = vcmp.eq.s32.totalorder %v477, 1
        %vm494 = vcmp.eq.s32.totalorder %v478, 1
        %vm495 = vcmp.eq.s32.totalorder %v479, 1
        %vm496 = vcmp.eq.s32.totalorder %v480, 1
        %vm497 = vcmp.eq.s32.totalorder %v481, 1
        %vm498 = vcmp.eq.s32.totalorder %v482, 1
        %vm499 = vcmp.eq.s32.totalorder %v483, 1
        %vm500 = vcmp.eq.s32.totalorder %v484, 1
        %v501 = vsel %vm485, 1, 0
        %v502 = vsel %vm486, 1, 0
        %v503 = vsel %vm487, 1, 0
        %v504 = vsel %vm488, 1, 0
        %v505 = vsel %vm489, 1, 0
        %v506 = vsel %vm490, 1, 0
        %v507 = vsel %vm491, 1, 0
        %v508 = vsel %vm492, 1, 0
        %v509 = vsel %vm493, 1, 0
        %v510 = vsel %vm494, 1, 0
        %v511 = vsel %vm495, 1, 0
        %v512 = vsel %vm496, 1, 0
        %v513 = vsel %vm497, 1, 0
        %v514 = vsel %vm498, 1, 0
        %v515 = vsel %vm499, 1, 0
        %v516 = vsel %vm500, 1, 0
        %vm517 = vcmp.eq.s32.totalorder %v501, 1
        %vm518 = vcmp.eq.s32.totalorder %v502, 1
        %vm519 = vcmp.eq.s32.totalorder %v503, 1
        %vm520 = vcmp.eq.s32.totalorder %v504, 1
        %vm521 = vcmp.eq.s32.totalorder %v505, 1
        %vm522 = vcmp.eq.s32.totalorder %v506, 1
        %vm523 = vcmp.eq.s32.totalorder %v507, 1
        %vm524 = vcmp.eq.s32.totalorder %v508, 1
        %vm525 = vcmp.eq.s32.totalorder %v509, 1
        %vm526 = vcmp.eq.s32.totalorder %v510, 1
        %vm527 = vcmp.eq.s32.totalorder %v511, 1
        %vm528 = vcmp.eq.s32.totalorder %v512, 1
        %vm529 = vcmp.eq.s32.totalorder %v513, 1
        %vm530 = vcmp.eq.s32.totalorder %v514, 1
        %vm531 = vcmp.eq.s32.totalorder %v515, 1
        %vm532 = vcmp.eq.s32.totalorder %v516, 1
        %v533 = vsel %vm517, %v438, %v358
        %v534 = vsel %vm518, %v440, %v361
        %v535 = vsel %vm519, %v442, %v366
        %v536 = vsel %vm520, %v444, %v369
        %v537 = vsel %vm521, %v446, %v374
        %v538 = vsel %vm522, %v448, %v377
        %v539 = vsel %vm523, %v450, %v382
        %v540 = vsel %vm524, %v452, %v385
        %v541 = vsel %vm525, %v454, %v390
        %v542 = vsel %vm526, %v456, %v393
        %v543 = vsel %vm527, %v458, %v398
        %v544 = vsel %vm528, %v460, %v401
        %v545 = vsel %vm529, %v462, %v406
        %v546 = vsel %vm530, %v464, %v409
        %v547 = vsel %vm531, %v466, %v414
        %v548 = vsel %vm532, %v468, %v417
        %549 = vrot.lane.b32.xlu0 %v533, 126
        %v550 = vpop.permute.xlu0 %549
        %551 = vrot.lane.b32.xlu0 %v534, 126
        %v552 = vpop.permute.xlu0 %551
        %553 = vrot.lane.b32.xlu0 %v535, 126
        %v554 = vpop.permute.xlu0 %553
        %555 = vrot.lane.b32.xlu0 %v536, 126
        %v556 = vpop.permute.xlu0 %555
        %557 = vrot.lane.b32.xlu0 %v537, 126
        %v558 = vpop.permute.xlu0 %557
        %559 = vrot.lane.b32.xlu0 %v538, 126
        %v560 = vpop.permute.xlu0 %559
        %561 = vrot.lane.b32.xlu0 %v539, 126
        %v562 = vpop.permute.xlu0 %561
        %563 = vrot.lane.b32.xlu0 %v540, 126
        %v564 = vpop.permute.xlu0 %563
        %565 = vrot.lane.b32.xlu0 %v541, 126
        %v566 = vpop.permute.xlu0 %565
        %567 = vrot.lane.b32.xlu0 %v542, 126
        %v568 = vpop.permute.xlu0 %567
        %569 = vrot.lane.b32.xlu0 %v543, 126
        %v570 = vpop.permute.xlu0 %569
        %571 = vrot.lane.b32.xlu0 %v544, 126
        %v572 = vpop.permute.xlu0 %571
        %573 = vrot.lane.b32.xlu0 %v545, 126
        %v574 = vpop.permute.xlu0 %573
        %575 = vrot.lane.b32.xlu0 %v546, 126
        %v576 = vpop.permute.xlu0 %575
        %577 = vrot.lane.b32.xlu0 %v547, 126
        %v578 = vpop.permute.xlu0 %577
        %579 = vrot.lane.b32.xlu0 %v548, 126
        %v580 = vpop.permute.xlu0 %579
        %v581 = vshra.s32 %v421, 1
        %v582 = vshra.s32 %v422, 1
        %v583 = vshra.s32 %v423, 1
        %v584 = vshra.s32 %v424, 1
        %v585 = vshra.s32 %v425, 1
        %v586 = vshra.s32 %v426, 1
        %v587 = vshra.s32 %v427, 1
        %v588 = vshra.s32 %v428, 1
        %v589 = vshra.s32 %v429, 1
        %v590 = vshra.s32 %v430, 1
        %v591 = vshra.s32 %v431, 1
        %v592 = vshra.s32 %v432, 1
        %v593 = vshra.s32 %v433, 1
        %v594 = vshra.s32 %v434, 1
        %v595 = vshra.s32 %v435, 1
        %v596 = vshra.s32 %v436, 1
        %v597 = vand.u32 %v581, 1
        %v598 = vand.u32 %v582, 1
        %v599 = vand.u32 %v583, 1
        %v600 = vand.u32 %v584, 1
        %v601 = vand.u32 %v585, 1
        %v602 = vand.u32 %v586, 1
        %v603 = vand.u32 %v587, 1
        %v604 = vand.u32 %v588, 1
        %v605 = vand.u32 %v589, 1
        %v606 = vand.u32 %v590, 1
        %v607 = vand.u32 %v591, 1
        %v608 = vand.u32 %v592, 1
        %v609 = vand.u32 %v593, 1
        %v610 = vand.u32 %v594, 1
        %v611 = vand.u32 %v595, 1
        %v612 = vand.u32 %v596, 1
        %vm613 = vcmp.eq.s32.totalorder %v597, 1
        %vm614 = vcmp.eq.s32.totalorder %v598, 1
        %vm615 = vcmp.eq.s32.totalorder %v599, 1
        %vm616 = vcmp.eq.s32.totalorder %v600, 1
        %vm617 = vcmp.eq.s32.totalorder %v601, 1
        %vm618 = vcmp.eq.s32.totalorder %v602, 1
        %vm619 = vcmp.eq.s32.totalorder %v603, 1
        %vm620 = vcmp.eq.s32.totalorder %v604, 1
        %vm621 = vcmp.eq.s32.totalorder %v605, 1
        %vm622 = vcmp.eq.s32.totalorder %v606, 1
        %vm623 = vcmp.eq.s32.totalorder %v607, 1
        %vm624 = vcmp.eq.s32.totalorder %v608, 1
        %vm625 = vcmp.eq.s32.totalorder %v609, 1
        %vm626 = vcmp.eq.s32.totalorder %v610, 1
        %vm627 = vcmp.eq.s32.totalorder %v611, 1
        %vm628 = vcmp.eq.s32.totalorder %v612, 1
        %v629 = vsel %vm613, 1, 0
        %v630 = vsel %vm614, 1, 0
        %v631 = vsel %vm615, 1, 0
        %v632 = vsel %vm616, 1, 0
        %v633 = vsel %vm617, 1, 0
        %v634 = vsel %vm618, 1, 0
        %v635 = vsel %vm619, 1, 0
        %v636 = vsel %vm620, 1, 0
        %v637 = vsel %vm621, 1, 0
        %v638 = vsel %vm622, 1, 0
        %v639 = vsel %vm623, 1, 0
        %v640 = vsel %vm624, 1, 0
        %v641 = vsel %vm625, 1, 0
        %v642 = vsel %vm626, 1, 0
        %v643 = vsel %vm627, 1, 0
        %v644 = vsel %vm628, 1, 0
        %vm645 = vcmp.eq.s32.totalorder %v629, 1
        %vm646 = vcmp.eq.s32.totalorder %v630, 1
        %vm647 = vcmp.eq.s32.totalorder %v631, 1
        %vm648 = vcmp.eq.s32.totalorder %v632, 1
        %vm649 = vcmp.eq.s32.totalorder %v633, 1
        %vm650 = vcmp.eq.s32.totalorder %v634, 1
        %vm651 = vcmp.eq.s32.totalorder %v635, 1
        %vm652 = vcmp.eq.s32.totalorder %v636, 1
        %vm653 = vcmp.eq.s32.totalorder %v637, 1
        %vm654 = vcmp.eq.s32.totalorder %v638, 1
        %vm655 = vcmp.eq.s32.totalorder %v639, 1
        %vm656 = vcmp.eq.s32.totalorder %v640, 1
        %vm657 = vcmp.eq.s32.totalorder %v641, 1
        %vm658 = vcmp.eq.s32.totalorder %v642, 1
        %vm659 = vcmp.eq.s32.totalorder %v643, 1
        %vm660 = vcmp.eq.s32.totalorder %v644, 1
        %v661 = vsel %vm645, %v550, %v533
        %v662 = vsel %vm646, %v552, %v534
        %v663 = vsel %vm647, %v554, %v535
        %v664 = vsel %vm648, %v556, %v536
        %v665 = vsel %vm649, %v558, %v537
        %v666 = vsel %vm650, %v560, %v538
        %v667 = vsel %vm651, %v562, %v539
        %v668 = vsel %vm652, %v564, %v540
        %v669 = vsel %vm653, %v566, %v541
        %v670 = vsel %vm654, %v568, %v542
        %v671 = vsel %vm655, %v570, %v543
        %v672 = vsel %vm656, %v572, %v544
        %v673 = vsel %vm657, %v574, %v545
        %v674 = vsel %vm658, %v576, %v546
        %v675 = vsel %vm659, %v578, %v547
        %v676 = vsel %vm660, %v580, %v548
        %677 = vrot.lane.b32.xlu0 %v661, 124
        %v678 = vpop.permute.xlu0 %677
        %679 = vrot.lane.b32.xlu0 %v662, 124
        %v680 = vpop.permute.xlu0 %679
        %681 = vrot.lane.b32.xlu0 %v663, 124
        %v682 = vpop.permute.xlu0 %681
        %683 = vrot.lane.b32.xlu0 %v664, 124
        %v684 = vpop.permute.xlu0 %683
        %685 = vrot.lane.b32.xlu0 %v665, 124
        %v686 = vpop.permute.xlu0 %685
        %687 = vrot.lane.b32.xlu0 %v666, 124
        %v688 = vpop.permute.xlu0 %687
        %689 = vrot.lane.b32.xlu0 %v667, 124
        %v690 = vpop.permute.xlu0 %689
        %691 = vrot.lane.b32.xlu0 %v668, 124
        %v692 = vpop.permute.xlu0 %691
        %693 = vrot.lane.b32.xlu0 %v669, 124
        %v694 = vpop.permute.xlu0 %693
        %695 = vrot.lane.b32.xlu0 %v670, 124
        %v696 = vpop.permute.xlu0 %695
        %697 = vrot.lane.b32.xlu0 %v671, 124
        %v698 = vpop.permute.xlu0 %697
        %699 = vrot.lane.b32.xlu0 %v672, 124
        %v700 = vpop.permute.xlu0 %699
        %701 = vrot.lane.b32.xlu0 %v673, 124
        %v702 = vpop.permute.xlu0 %701
        %703 = vrot.lane.b32.xlu0 %v674, 124
        %v704 = vpop.permute.xlu0 %703
        %705 = vrot.lane.b32.xlu0 %v675, 124
        %v706 = vpop.permute.xlu0 %705
        %707 = vrot.lane.b32.xlu0 %v676, 124
        %v708 = vpop.permute.xlu0 %707
        %v709 = vshra.s32 %v421, 2
        %v710 = vshra.s32 %v422, 2
        %v711 = vshra.s32 %v423, 2
        %v712 = vshra.s32 %v424, 2
        %v713 = vshra.s32 %v425, 2
        %v714 = vshra.s32 %v426, 2
        %v715 = vshra.s32 %v427, 2
        %v716 = vshra.s32 %v428, 2
        %v717 = vshra.s32 %v429, 2
        %v718 = vshra.s32 %v430, 2
        %v719 = vshra.s32 %v431, 2
        %v720 = vshra.s32 %v432, 2
        %v721 = vshra.s32 %v433, 2
        %v722 = vshra.s32 %v434, 2
        %v723 = vshra.s32 %v435, 2
        %v724 = vshra.s32 %v436, 2
        %v725 = vand.u32 %v709, 1
        %v726 = vand.u32 %v710, 1
        %v727 = vand.u32 %v711, 1
        %v728 = vand.u32 %v712, 1
        %v729 = vand.u32 %v713, 1
        %v730 = vand.u32 %v714, 1
        %v731 = vand.u32 %v715, 1
        %v732 = vand.u32 %v716, 1
        %v733 = vand.u32 %v717, 1
        %v734 = vand.u32 %v718, 1
        %v735 = vand.u32 %v719, 1
        %v736 = vand.u32 %v720, 1
        %v737 = vand.u32 %v721, 1
        %v738 = vand.u32 %v722, 1
        %v739 = vand.u32 %v723, 1
        %v740 = vand.u32 %v724, 1
        %vm741 = vcmp.eq.s32.totalorder %v725, 1
        %vm742 = vcmp.eq.s32.totalorder %v726, 1
        %vm743 = vcmp.eq.s32.totalorder %v727, 1
        %vm744 = vcmp.eq.s32.totalorder %v728, 1
        %vm745 = vcmp.eq.s32.totalorder %v729, 1
        %vm746 = vcmp.eq.s32.totalorder %v730, 1
        %vm747 = vcmp.eq.s32.totalorder %v731, 1
        %vm748 = vcmp.eq.s32.totalorder %v732, 1
        %vm749 = vcmp.eq.s32.totalorder %v733, 1
        %vm750 = vcmp.eq.s32.totalorder %v734, 1
        %vm751 = vcmp.eq.s32.totalorder %v735, 1
        %vm752 = vcmp.eq.s32.totalorder %v736, 1
        %vm753 = vcmp.eq.s32.totalorder %v737, 1
        %vm754 = vcmp.eq.s32.totalorder %v738, 1
        %vm755 = vcmp.eq.s32.totalorder %v739, 1
        %vm756 = vcmp.eq.s32.totalorder %v740, 1
        %v757 = vsel %vm741, 1, 0
        %v758 = vsel %vm742, 1, 0
        %v759 = vsel %vm743, 1, 0
        %v760 = vsel %vm744, 1, 0
        %v761 = vsel %vm745, 1, 0
        %v762 = vsel %vm746, 1, 0
        %v763 = vsel %vm747, 1, 0
        %v764 = vsel %vm748, 1, 0
        %v765 = vsel %vm749, 1, 0
        %v766 = vsel %vm750, 1, 0
        %v767 = vsel %vm751, 1, 0
        %v768 = vsel %vm752, 1, 0
        %v769 = vsel %vm753, 1, 0
        %v770 = vsel %vm754, 1, 0
        %v771 = vsel %vm755, 1, 0
        %v772 = vsel %vm756, 1, 0
        %vm773 = vcmp.eq.s32.totalorder %v757, 1
        %vm774 = vcmp.eq.s32.totalorder %v758, 1
        %vm775 = vcmp.eq.s32.totalorder %v759, 1
        %vm776 = vcmp.eq.s32.totalorder %v760, 1
        %vm777 = vcmp.eq.s32.totalorder %v761, 1
        %vm778 = vcmp.eq.s32.totalorder %v762, 1
        %vm779 = vcmp.eq.s32.totalorder %v763, 1
        %vm780 = vcmp.eq.s32.totalorder %v764, 1
        %vm781 = vcmp.eq.s32.totalorder %v765, 1
        %vm782 = vcmp.eq.s32.totalorder %v766, 1
        %vm783 = vcmp.eq.s32.totalorder %v767, 1
        %vm784 = vcmp.eq.s32.totalorder %v768, 1
        %vm785 = vcmp.eq.s32.totalorder %v769, 1
        %vm786 = vcmp.eq.s32.totalorder %v770, 1
        %vm787 = vcmp.eq.s32.totalorder %v771, 1
        %vm788 = vcmp.eq.s32.totalorder %v772, 1
        %v789 = vsel %vm773, %v678, %v661
        %v790 = vsel %vm774, %v680, %v662
        %v791 = vsel %vm775, %v682, %v663
        %v792 = vsel %vm776, %v684, %v664
        %v793 = vsel %vm777, %v686, %v665
        %v794 = vsel %vm778, %v688, %v666
        %v795 = vsel %vm779, %v690, %v667
        %v796 = vsel %vm780, %v692, %v668
        %v797 = vsel %vm781, %v694, %v669
        %v798 = vsel %vm782, %v696, %v670
        %v799 = vsel %vm783, %v698, %v671
        %v800 = vsel %vm784, %v700, %v672
        %v801 = vsel %vm785, %v702, %v673
        %v802 = vsel %vm786, %v704, %v674
        %v803 = vsel %vm787, %v706, %v675
        %v804 = vsel %vm788, %v708, %v676
        %805 = vrot.lane.b32.xlu0 %v789, 120
        %v806 = vpop.permute.xlu0 %805
        %807 = vrot.lane.b32.xlu0 %v790, 120
        %v808 = vpop.permute.xlu0 %807
        %809 = vrot.lane.b32.xlu0 %v791, 120
        %v810 = vpop.permute.xlu0 %809
        %811 = vrot.lane.b32.xlu0 %v792, 120
        %v812 = vpop.permute.xlu0 %811
        %813 = vrot.lane.b32.xlu0 %v793, 120
        %v814 = vpop.permute.xlu0 %813
        %815 = vrot.lane.b32.xlu0 %v794, 120
        %v816 = vpop.permute.xlu0 %815
        %817 = vrot.lane.b32.xlu0 %v795, 120
        %v818 = vpop.permute.xlu0 %817
        %819 = vrot.lane.b32.xlu0 %v796, 120
        %v820 = vpop.permute.xlu0 %819
        %821 = vrot.lane.b32.xlu0 %v797, 120
        %v822 = vpop.permute.xlu0 %821
        %823 = vrot.lane.b32.xlu0 %v798, 120
        %v824 = vpop.permute.xlu0 %823
        %825 = vrot.lane.b32.xlu0 %v799, 120
        %v826 = vpop.permute.xlu0 %825
        %827 = vrot.lane.b32.xlu0 %v800, 120
        %v828 = vpop.permute.xlu0 %827
        %829 = vrot.lane.b32.xlu0 %v801, 120
        %v830 = vpop.permute.xlu0 %829
        %831 = vrot.lane.b32.xlu0 %v802, 120
        %v832 = vpop.permute.xlu0 %831
        %833 = vrot.lane.b32.xlu0 %v803, 120
        %v834 = vpop.permute.xlu0 %833
        %835 = vrot.lane.b32.xlu0 %v804, 120
        %v836 = vpop.permute.xlu0 %835
        %v837 = vshra.s32 %v421, 3
        %v838 = vshra.s32 %v422, 3
        %v839 = vshra.s32 %v423, 3
        %v840 = vshra.s32 %v424, 3
        %v841 = vshra.s32 %v425, 3
        %v842 = vshra.s32 %v426, 3
        %v843 = vshra.s32 %v427, 3
        %v844 = vshra.s32 %v428, 3
        %v845 = vshra.s32 %v429, 3
        %v846 = vshra.s32 %v430, 3
        %v847 = vshra.s32 %v431, 3
        %v848 = vshra.s32 %v432, 3
        %v849 = vshra.s32 %v433, 3
        %v850 = vshra.s32 %v434, 3
        %v851 = vshra.s32 %v435, 3
        %v852 = vshra.s32 %v436, 3
        %v853 = vand.u32 %v837, 1
        %v854 = vand.u32 %v838, 1
        %v855 = vand.u32 %v839, 1
        %v856 = vand.u32 %v840, 1
        %v857 = vand.u32 %v841, 1
        %v858 = vand.u32 %v842, 1
        %v859 = vand.u32 %v843, 1
        %v860 = vand.u32 %v844, 1
        %v861 = vand.u32 %v845, 1
        %v862 = vand.u32 %v846, 1
        %v863 = vand.u32 %v847, 1
        %v864 = vand.u32 %v848, 1
        %v865 = vand.u32 %v849, 1
        %v866 = vand.u32 %v850, 1
        %v867 = vand.u32 %v851, 1
        %v868 = vand.u32 %v852, 1
        %vm869 = vcmp.eq.s32.totalorder %v853, 1
        %vm870 = vcmp.eq.s32.totalorder %v854, 1
        %vm871 = vcmp.eq.s32.totalorder %v855, 1
        %vm872 = vcmp.eq.s32.totalorder %v856, 1
        %vm873 = vcmp.eq.s32.totalorder %v857, 1
        %vm874 = vcmp.eq.s32.totalorder %v858, 1
        %vm875 = vcmp.eq.s32.totalorder %v859, 1
        %vm876 = vcmp.eq.s32.totalorder %v860, 1
        %vm877 = vcmp.eq.s32.totalorder %v861, 1
        %vm878 = vcmp.eq.s32.totalorder %v862, 1
        %vm879 = vcmp.eq.s32.totalorder %v863, 1
        %vm880 = vcmp.eq.s32.totalorder %v864, 1
        %vm881 = vcmp.eq.s32.totalorder %v865, 1
        %vm882 = vcmp.eq.s32.totalorder %v866, 1
        %vm883 = vcmp.eq.s32.totalorder %v867, 1
        %vm884 = vcmp.eq.s32.totalorder %v868, 1
        %v885 = vsel %vm869, 1, 0
        %v886 = vsel %vm870, 1, 0
        %v887 = vsel %vm871, 1, 0
        %v888 = vsel %vm872, 1, 0
        %v889 = vsel %vm873, 1, 0
        %v890 = vsel %vm874, 1, 0
        %v891 = vsel %vm875, 1, 0
        %v892 = vsel %vm876, 1, 0
        %v893 = vsel %vm877, 1, 0
        %v894 = vsel %vm878, 1, 0
        %v895 = vsel %vm879, 1, 0
        %v896 = vsel %vm880, 1, 0
        %v897 = vsel %vm881, 1, 0
        %v898 = vsel %vm882, 1, 0
        %v899 = vsel %vm883, 1, 0
        %v900 = vsel %vm884, 1, 0
        %vm901 = vcmp.eq.s32.totalorder %v885, 1
        %vm902 = vcmp.eq.s32.totalorder %v886, 1
        %vm903 = vcmp.eq.s32.totalorder %v887, 1
        %vm904 = vcmp.eq.s32.totalorder %v888, 1
        %vm905 = vcmp.eq.s32.totalorder %v889, 1
        %vm906 = vcmp.eq.s32.totalorder %v890, 1
        %vm907 = vcmp.eq.s32.totalorder %v891, 1
        %vm908 = vcmp.eq.s32.totalorder %v892, 1
        %vm909 = vcmp.eq.s32.totalorder %v893, 1
        %vm910 = vcmp.eq.s32.totalorder %v894, 1
        %vm911 = vcmp.eq.s32.totalorder %v895, 1
        %vm912 = vcmp.eq.s32.totalorder %v896, 1
        %vm913 = vcmp.eq.s32.totalorder %v897, 1
        %vm914 = vcmp.eq.s32.totalorder %v898, 1
        %vm915 = vcmp.eq.s32.totalorder %v899, 1
        %vm916 = vcmp.eq.s32.totalorder %v900, 1
        %v917 = vsel %vm901, %v806, %v789
        %v918 = vsel %vm902, %v808, %v790
        %v919 = vsel %vm903, %v810, %v791
        %v920 = vsel %vm904, %v812, %v792
        %v921 = vsel %vm905, %v814, %v793
        %v922 = vsel %vm906, %v816, %v794
        %v923 = vsel %vm907, %v818, %v795
        %v924 = vsel %vm908, %v820, %v796
        %v925 = vsel %vm909, %v822, %v797
        %v926 = vsel %vm910, %v824, %v798
        %v927 = vsel %vm911, %v826, %v799
        %v928 = vsel %vm912, %v828, %v800
        %v929 = vsel %vm913, %v830, %v801
        %v930 = vsel %vm914, %v832, %v802
        %v931 = vsel %vm915, %v834, %v803
        %v932 = vsel %vm916, %v836, %v804
        %933 = vrot.lane.b32.xlu0 %v917, 112
        %v934 = vpop.permute.xlu0 %933
        %935 = vrot.lane.b32.xlu0 %v918, 112
        %v936 = vpop.permute.xlu0 %935
        %937 = vrot.lane.b32.xlu0 %v919, 112
        %v938 = vpop.permute.xlu0 %937
        %939 = vrot.lane.b32.xlu0 %v920, 112
        %v940 = vpop.permute.xlu0 %939
        %941 = vrot.lane.b32.xlu0 %v921, 112
        %v942 = vpop.permute.xlu0 %941
        %943 = vrot.lane.b32.xlu0 %v922, 112
        %v944 = vpop.permute.xlu0 %943
        %945 = vrot.lane.b32.xlu0 %v923, 112
        %v946 = vpop.permute.xlu0 %945
        %947 = vrot.lane.b32.xlu0 %v924, 112
        %v948 = vpop.permute.xlu0 %947
        %949 = vrot.lane.b32.xlu0 %v925, 112
        %v950 = vpop.permute.xlu0 %949
        %951 = vrot.lane.b32.xlu0 %v926, 112
        %v952 = vpop.permute.xlu0 %951
        %953 = vrot.lane.b32.xlu0 %v927, 112
        %v954 = vpop.permute.xlu0 %953
        %955 = vrot.lane.b32.xlu0 %v928, 112
        %v956 = vpop.permute.xlu0 %955
        %957 = vrot.lane.b32.xlu0 %v929, 112
        %v958 = vpop.permute.xlu0 %957
        %959 = vrot.lane.b32.xlu0 %v930, 112
        %v960 = vpop.permute.xlu0 %959
        %961 = vrot.lane.b32.xlu0 %v931, 112
        %v962 = vpop.permute.xlu0 %961
        %963 = vrot.lane.b32.xlu0 %v932, 112
        %v964 = vpop.permute.xlu0 %963
        %v965 = vshra.s32 %v421, 4
        %v966 = vshra.s32 %v422, 4
        %v967 = vshra.s32 %v423, 4
        %v968 = vshra.s32 %v424, 4
        %v969 = vshra.s32 %v425, 4
        %v970 = vshra.s32 %v426, 4
        %v971 = vshra.s32 %v427, 4
        %v972 = vshra.s32 %v428, 4
        %v973 = vshra.s32 %v429, 4
        %v974 = vshra.s32 %v430, 4
        %v975 = vshra.s32 %v431, 4
        %v976 = vshra.s32 %v432, 4
        %v977 = vshra.s32 %v433, 4
        %v978 = vshra.s32 %v434, 4
        %v979 = vshra.s32 %v435, 4
        %v980 = vshra.s32 %v436, 4
        %v981 = vand.u32 %v965, 1
        %v982 = vand.u32 %v966, 1
        %v983 = vand.u32 %v967, 1
        %v984 = vand.u32 %v968, 1
        %v985 = vand.u32 %v969, 1
        %v986 = vand.u32 %v970, 1
        %v987 = vand.u32 %v971, 1
        %v988 = vand.u32 %v972, 1
        %v989 = vand.u32 %v973, 1
        %v990 = vand.u32 %v974, 1
        %v991 = vand.u32 %v975, 1
        %v992 = vand.u32 %v976, 1
        %v993 = vand.u32 %v977, 1
        %v994 = vand.u32 %v978, 1
        %v995 = vand.u32 %v979, 1
        %v996 = vand.u32 %v980, 1
        %vm997 = vcmp.eq.s32.totalorder %v981, 1
        %vm998 = vcmp.eq.s32.totalorder %v982, 1
        %vm999 = vcmp.eq.s32.totalorder %v983, 1
        %vm1000 = vcmp.eq.s32.totalorder %v984, 1
        %vm1001 = vcmp.eq.s32.totalorder %v985, 1
        %vm1002 = vcmp.eq.s32.totalorder %v986, 1
        %vm1003 = vcmp.eq.s32.totalorder %v987, 1
        %vm1004 = vcmp.eq.s32.totalorder %v988, 1
        %vm1005 = vcmp.eq.s32.totalorder %v989, 1
        %vm1006 = vcmp.eq.s32.totalorder %v990, 1
        %vm1007 = vcmp.eq.s32.totalorder %v991, 1
        %vm1008 = vcmp.eq.s32.totalorder %v992, 1
        %vm1009 = vcmp.eq.s32.totalorder %v993, 1
        %vm1010 = vcmp.eq.s32.totalorder %v994, 1
        %vm1011 = vcmp.eq.s32.totalorder %v995, 1
        %vm1012 = vcmp.eq.s32.totalorder %v996, 1
        %v1013 = vsel %vm997, 1, 0
        %v1014 = vsel %vm998, 1, 0
        %v1015 = vsel %vm999, 1, 0
        %v1016 = vsel %vm1000, 1, 0
        %v1017 = vsel %vm1001, 1, 0
        %v1018 = vsel %vm1002, 1, 0
        %v1019 = vsel %vm1003, 1, 0
        %v1020 = vsel %vm1004, 1, 0
        %v1021 = vsel %vm1005, 1, 0
        %v1022 = vsel %vm1006, 1, 0
        %v1023 = vsel %vm1007, 1, 0
        %v1024 = vsel %vm1008, 1, 0
        %v1025 = vsel %vm1009, 1, 0
        %v1026 = vsel %vm1010, 1, 0
        %v1027 = vsel %vm1011, 1, 0
        %v1028 = vsel %vm1012, 1, 0
        %vm1029 = vcmp.eq.s32.totalorder %v1013, 1
        %vm1030 = vcmp.eq.s32.totalorder %v1014, 1
        %vm1031 = vcmp.eq.s32.totalorder %v1015, 1
        %vm1032 = vcmp.eq.s32.totalorder %v1016, 1
        %vm1033 = vcmp.eq.s32.totalorder %v1017, 1
        %vm1034 = vcmp.eq.s32.totalorder %v1018, 1
        %vm1035 = vcmp.eq.s32.totalorder %v1019, 1
        %vm1036 = vcmp.eq.s32.totalorder %v1020, 1
        %vm1037 = vcmp.eq.s32.totalorder %v1021, 1
        %vm1038 = vcmp.eq.s32.totalorder %v1022, 1
        %vm1039 = vcmp.eq.s32.totalorder %v1023, 1
        %vm1040 = vcmp.eq.s32.totalorder %v1024, 1
        %vm1041 = vcmp.eq.s32.totalorder %v1025, 1
        %vm1042 = vcmp.eq.s32.totalorder %v1026, 1
        %vm1043 = vcmp.eq.s32.totalorder %v1027, 1
        %vm1044 = vcmp.eq.s32.totalorder %v1028, 1
        %v1045 = vsel %vm1029, %v934, %v917
        %v1046 = vsel %vm1030, %v936, %v918
        %v1047 = vsel %vm1031, %v938, %v919
        %v1048 = vsel %vm1032, %v940, %v920
        %v1049 = vsel %vm1033, %v942, %v921
        %v1050 = vsel %vm1034, %v944, %v922
        %v1051 = vsel %vm1035, %v946, %v923
        %v1052 = vsel %vm1036, %v948, %v924
        %v1053 = vsel %vm1037, %v950, %v925
        %v1054 = vsel %vm1038, %v952, %v926
        %v1055 = vsel %vm1039, %v954, %v927
        %v1056 = vsel %vm1040, %v956, %v928
        %v1057 = vsel %vm1041, %v958, %v929
        %v1058 = vsel %vm1042, %v960, %v930
        %v1059 = vsel %vm1043, %v962, %v931
        %v1060 = vsel %vm1044, %v964, %v932
        %1061 = vrot.lane.b32.xlu0 %v1045, 96
        %v1062 = vpop.permute.xlu0 %1061
        %1063 = vrot.lane.b32.xlu0 %v1046, 96
        %v1064 = vpop.permute.xlu0 %1063
        %1065 = vrot.lane.b32.xlu0 %v1047, 96
        %v1066 = vpop.permute.xlu0 %1065
        %1067 = vrot.lane.b32.xlu0 %v1048, 96
        %v1068 = vpop.permute.xlu0 %1067
        %1069 = vrot.lane.b32.xlu0 %v1049, 96
        %v1070 = vpop.permute.xlu0 %1069
        %1071 = vrot.lane.b32.xlu0 %v1050, 96
        %v1072 = vpop.permute.xlu0 %1071
        %1073 = vrot.lane.b32.xlu0 %v1051, 96
        %v1074 = vpop.permute.xlu0 %1073
        %1075 = vrot.lane.b32.xlu0 %v1052, 96
        %v1076 = vpop.permute.xlu0 %1075
        %1077 = vrot.lane.b32.xlu0 %v1053, 96
        %v1078 = vpop.permute.xlu0 %1077
        %1079 = vrot.lane.b32.xlu0 %v1054, 96
        %v1080 = vpop.permute.xlu0 %1079
        %1081 = vrot.lane.b32.xlu0 %v1055, 96
        %v1082 = vpop.permute.xlu0 %1081
        %1083 = vrot.lane.b32.xlu0 %v1056, 96
        %v1084 = vpop.permute.xlu0 %1083
        %1085 = vrot.lane.b32.xlu0 %v1057, 96
        %v1086 = vpop.permute.xlu0 %1085
        %1087 = vrot.lane.b32.xlu0 %v1058, 96
        %v1088 = vpop.permute.xlu0 %1087
        %1089 = vrot.lane.b32.xlu0 %v1059, 96
        %v1090 = vpop.permute.xlu0 %1089
        %1091 = vrot.lane.b32.xlu0 %v1060, 96
        %v1092 = vpop.permute.xlu0 %1091
        %v1093 = vshra.s32 %v421, 5
        %v1094 = vshra.s32 %v422, 5
        %v1095 = vshra.s32 %v423, 5
        %v1096 = vshra.s32 %v424, 5
        %v1097 = vshra.s32 %v425, 5
        %v1098 = vshra.s32 %v426, 5
        %v1099 = vshra.s32 %v427, 5
        %v1100 = vshra.s32 %v428, 5
        %v1101 = vshra.s32 %v429, 5
        %v1102 = vshra.s32 %v430, 5
        %v1103 = vshra.s32 %v431, 5
        %v1104 = vshra.s32 %v432, 5
        %v1105 = vshra.s32 %v433, 5
        %v1106 = vshra.s32 %v434, 5
        %v1107 = vshra.s32 %v435, 5
        %v1108 = vshra.s32 %v436, 5
        %v1109 = vand.u32 %v1093, 1
        %v1110 = vand.u32 %v1094, 1
        %v1111 = vand.u32 %v1095, 1
        %v1112 = vand.u32 %v1096, 1
        %v1113 = vand.u32 %v1097, 1
        %v1114 = vand.u32 %v1098, 1
        %v1115 = vand.u32 %v1099, 1
        %v1116 = vand.u32 %v1100, 1
        %v1117 = vand.u32 %v1101, 1
        %v1118 = vand.u32 %v1102, 1
        %v1119 = vand.u32 %v1103, 1
        %v1120 = vand.u32 %v1104, 1
        %v1121 = vand.u32 %v1105, 1
        %v1122 = vand.u32 %v1106, 1
        %v1123 = vand.u32 %v1107, 1
        %v1124 = vand.u32 %v1108, 1
        %vm1125 = vcmp.eq.s32.totalorder %v1109, 1
        %vm1126 = vcmp.eq.s32.totalorder %v1110, 1
        %vm1127 = vcmp.eq.s32.totalorder %v1111, 1
        %vm1128 = vcmp.eq.s32.totalorder %v1112, 1
        %vm1129 = vcmp.eq.s32.totalorder %v1113, 1
        %vm1130 = vcmp.eq.s32.totalorder %v1114, 1
        %vm1131 = vcmp.eq.s32.totalorder %v1115, 1
        %vm1132 = vcmp.eq.s32.totalorder %v1116, 1
        %vm1133 = vcmp.eq.s32.totalorder %v1117, 1
        %vm1134 = vcmp.eq.s32.totalorder %v1118, 1
        %vm1135 = vcmp.eq.s32.totalorder %v1119, 1
        %vm1136 = vcmp.eq.s32.totalorder %v1120, 1
        %vm1137 = vcmp.eq.s32.totalorder %v1121, 1
        %vm1138 = vcmp.eq.s32.totalorder %v1122, 1
        %vm1139 = vcmp.eq.s32.totalorder %v1123, 1
        %vm1140 = vcmp.eq.s32.totalorder %v1124, 1
        %v1141 = vsel %vm1125, 1, 0
        %v1142 = vsel %vm1126, 1, 0
        %v1143 = vsel %vm1127, 1, 0
        %v1144 = vsel %vm1128, 1, 0
        %v1145 = vsel %vm1129, 1, 0
        %v1146 = vsel %vm1130, 1, 0
        %v1147 = vsel %vm1131, 1, 0
        %v1148 = vsel %vm1132, 1, 0
        %v1149 = vsel %vm1133, 1, 0
        %v1150 = vsel %vm1134, 1, 0
        %v1151 = vsel %vm1135, 1, 0
        %v1152 = vsel %vm1136, 1, 0
        %v1153 = vsel %vm1137, 1, 0
        %v1154 = vsel %vm1138, 1, 0
        %v1155 = vsel %vm1139, 1, 0
        %v1156 = vsel %vm1140, 1, 0
        %vm1157 = vcmp.eq.s32.totalorder %v1141, 1
        %vm1158 = vcmp.eq.s32.totalorder %v1142, 1
        %vm1159 = vcmp.eq.s32.totalorder %v1143, 1
        %vm1160 = vcmp.eq.s32.totalorder %v1144, 1
        %vm1161 = vcmp.eq.s32.totalorder %v1145, 1
        %vm1162 = vcmp.eq.s32.totalorder %v1146, 1
        %vm1163 = vcmp.eq.s32.totalorder %v1147, 1
        %vm1164 = vcmp.eq.s32.totalorder %v1148, 1
        %vm1165 = vcmp.eq.s32.totalorder %v1149, 1
        %vm1166 = vcmp.eq.s32.totalorder %v1150, 1
        %vm1167 = vcmp.eq.s32.totalorder %v1151, 1
        %vm1168 = vcmp.eq.s32.totalorder %v1152, 1
        %vm1169 = vcmp.eq.s32.totalorder %v1153, 1
        %vm1170 = vcmp.eq.s32.totalorder %v1154, 1
        %vm1171 = vcmp.eq.s32.totalorder %v1155, 1
        %vm1172 = vcmp.eq.s32.totalorder %v1156, 1
        %v1173 = vsel %vm1157, %v1062, %v1045
        %v1174 = vsel %vm1158, %v1064, %v1046
        %v1175 = vsel %vm1159, %v1066, %v1047
        %v1176 = vsel %vm1160, %v1068, %v1048
        %v1177 = vsel %vm1161, %v1070, %v1049
        %v1178 = vsel %vm1162, %v1072, %v1050
        %v1179 = vsel %vm1163, %v1074, %v1051
        %v1180 = vsel %vm1164, %v1076, %v1052
        %v1181 = vsel %vm1165, %v1078, %v1053
        %v1182 = vsel %vm1166, %v1080, %v1054
        %v1183 = vsel %vm1167, %v1082, %v1055
        %v1184 = vsel %vm1168, %v1084, %v1056
        %v1185 = vsel %vm1169, %v1086, %v1057
        %v1186 = vsel %vm1170, %v1088, %v1058
        %v1187 = vsel %vm1171, %v1090, %v1059
        %v1188 = vsel %vm1172, %v1092, %v1060
        %1189 = vrot.lane.b32.xlu0 %v1173, 64
        %v1190 = vpop.permute.xlu0 %1189
        %1191 = vrot.lane.b32.xlu0 %v1174, 64
        %v1192 = vpop.permute.xlu0 %1191
        %1193 = vrot.lane.b32.xlu0 %v1175, 64
        %v1194 = vpop.permute.xlu0 %1193
        %1195 = vrot.lane.b32.xlu0 %v1176, 64
        %v1196 = vpop.permute.xlu0 %1195
        %1197 = vrot.lane.b32.xlu0 %v1177, 64
        %v1198 = vpop.permute.xlu0 %1197
        %1199 = vrot.lane.b32.xlu0 %v1178, 64
        %v1200 = vpop.permute.xlu0 %1199
        %1201 = vrot.lane.b32.xlu0 %v1179, 64
        %v1202 = vpop.permute.xlu0 %1201
        %1203 = vrot.lane.b32.xlu0 %v1180, 64
        %v1204 = vpop.permute.xlu0 %1203
        %1205 = vrot.lane.b32.xlu0 %v1181, 64
        %v1206 = vpop.permute.xlu0 %1205
        %1207 = vrot.lane.b32.xlu0 %v1182, 64
        %v1208 = vpop.permute.xlu0 %1207
        %1209 = vrot.lane.b32.xlu0 %v1183, 64
        %v1210 = vpop.permute.xlu0 %1209
        %1211 = vrot.lane.b32.xlu0 %v1184, 64
        %v1212 = vpop.permute.xlu0 %1211
        %1213 = vrot.lane.b32.xlu0 %v1185, 64
        %v1214 = vpop.permute.xlu0 %1213
        %1215 = vrot.lane.b32.xlu0 %v1186, 64
        %v1216 = vpop.permute.xlu0 %1215
        %1217 = vrot.lane.b32.xlu0 %v1187, 64
        %v1218 = vpop.permute.xlu0 %1217
        %1219 = vrot.lane.b32.xlu0 %v1188, 64
        %v1220 = vpop.permute.xlu0 %1219
        %v1221 = vshra.s32 %v421, 6
        %v1222 = vshra.s32 %v422, 6
        %v1223 = vshra.s32 %v423, 6
        %v1224 = vshra.s32 %v424, 6
        %v1225 = vshra.s32 %v425, 6
        %v1226 = vshra.s32 %v426, 6
        %v1227 = vshra.s32 %v427, 6
        %v1228 = vshra.s32 %v428, 6
        %v1229 = vshra.s32 %v429, 6
        %v1230 = vshra.s32 %v430, 6
        %v1231 = vshra.s32 %v431, 6
        %v1232 = vshra.s32 %v432, 6
        %v1233 = vshra.s32 %v433, 6
        %v1234 = vshra.s32 %v434, 6
        %v1235 = vshra.s32 %v435, 6
        %v1236 = vshra.s32 %v436, 6
        %v1237 = vand.u32 %v1221, 1
        %v1238 = vand.u32 %v1222, 1
        %v1239 = vand.u32 %v1223, 1
        %v1240 = vand.u32 %v1224, 1
        %v1241 = vand.u32 %v1225, 1
        %v1242 = vand.u32 %v1226, 1
        %v1243 = vand.u32 %v1227, 1
        %v1244 = vand.u32 %v1228, 1
        %v1245 = vand.u32 %v1229, 1
        %v1246 = vand.u32 %v1230, 1
        %v1247 = vand.u32 %v1231, 1
        %v1248 = vand.u32 %v1232, 1
        %v1249 = vand.u32 %v1233, 1
        %v1250 = vand.u32 %v1234, 1
        %v1251 = vand.u32 %v1235, 1
        %v1252 = vand.u32 %v1236, 1
        %vm1253 = vcmp.eq.s32.totalorder %v1237, 1
        %vm1254 = vcmp.eq.s32.totalorder %v1238, 1
        %vm1255 = vcmp.eq.s32.totalorder %v1239, 1
        %vm1256 = vcmp.eq.s32.totalorder %v1240, 1
        %vm1257 = vcmp.eq.s32.totalorder %v1241, 1
        %vm1258 = vcmp.eq.s32.totalorder %v1242, 1
        %vm1259 = vcmp.eq.s32.totalorder %v1243, 1
        %vm1260 = vcmp.eq.s32.totalorder %v1244, 1
        %vm1261 = vcmp.eq.s32.totalorder %v1245, 1
        %vm1262 = vcmp.eq.s32.totalorder %v1246, 1
        %vm1263 = vcmp.eq.s32.totalorder %v1247, 1
        %vm1264 = vcmp.eq.s32.totalorder %v1248, 1
        %vm1265 = vcmp.eq.s32.totalorder %v1249, 1
        %vm1266 = vcmp.eq.s32.totalorder %v1250, 1
        %vm1267 = vcmp.eq.s32.totalorder %v1251, 1
        %vm1268 = vcmp.eq.s32.totalorder %v1252, 1
        %v1269 = vsel %vm1253, 1, 0
        %v1270 = vsel %vm1254, 1, 0
        %v1271 = vsel %vm1255, 1, 0
        %v1272 = vsel %vm1256, 1, 0
        %v1273 = vsel %vm1257, 1, 0
        %v1274 = vsel %vm1258, 1, 0
        %v1275 = vsel %vm1259, 1, 0
        %v1276 = vsel %vm1260, 1, 0
        %v1277 = vsel %vm1261, 1, 0
        %v1278 = vsel %vm1262, 1, 0
        %v1279 = vsel %vm1263, 1, 0
        %v1280 = vsel %vm1264, 1, 0
        %v1281 = vsel %vm1265, 1, 0
        %v1282 = vsel %vm1266, 1, 0
        %v1283 = vsel %vm1267, 1, 0
        %v1284 = vsel %vm1268, 1, 0
        %vm1285 = vcmp.eq.s32.totalorder %v1269, 1
        %vm1286 = vcmp.eq.s32.totalorder %v1270, 1
        %vm1287 = vcmp.eq.s32.totalorder %v1271, 1
        %vm1288 = vcmp.eq.s32.totalorder %v1272, 1
        %vm1289 = vcmp.eq.s32.totalorder %v1273, 1
        %vm1290 = vcmp.eq.s32.totalorder %v1274, 1
        %vm1291 = vcmp.eq.s32.totalorder %v1275, 1
        %vm1292 = vcmp.eq.s32.totalorder %v1276, 1
        %vm1293 = vcmp.eq.s32.totalorder %v1277, 1
        %vm1294 = vcmp.eq.s32.totalorder %v1278, 1
        %vm1295 = vcmp.eq.s32.totalorder %v1279, 1
        %vm1296 = vcmp.eq.s32.totalorder %v1280, 1
        %vm1297 = vcmp.eq.s32.totalorder %v1281, 1
        %vm1298 = vcmp.eq.s32.totalorder %v1282, 1
        %vm1299 = vcmp.eq.s32.totalorder %v1283, 1
        %vm1300 = vcmp.eq.s32.totalorder %v1284, 1
        %v1301 = vsel %vm1285, %v1190, %v1173
        %v1302 = vsel %vm1286, %v1192, %v1174
        %v1303 = vsel %vm1287, %v1194, %v1175
        %v1304 = vsel %vm1288, %v1196, %v1176
        %v1305 = vsel %vm1289, %v1198, %v1177
        %v1306 = vsel %vm1290, %v1200, %v1178
        %v1307 = vsel %vm1291, %v1202, %v1179
        %v1308 = vsel %vm1292, %v1204, %v1180
        %v1309 = vsel %vm1293, %v1206, %v1181
        %v1310 = vsel %vm1294, %v1208, %v1182
        %v1311 = vsel %vm1295, %v1210, %v1183
        %v1312 = vsel %vm1296, %v1212, %v1184
        %v1313 = vsel %vm1297, %v1214, %v1185
        %v1314 = vsel %vm1298, %v1216, %v1186
        %v1315 = vsel %vm1299, %v1218, %v1187
        %v1316 = vsel %vm1300, %v1220, %v1188
        %v1317 = vadd.f32 %v1301, %v1302
        %v1318 = vadd.f32 %v1317, %v1303
        %v1319 = vadd.f32 %v1318, %v1304
        %v1320 = vadd.f32 %v1319, %v1305
        %v1321 = vadd.f32 %v1320, %v1306
        %v1322 = vadd.f32 %v1321, %v1307
        %v1323 = vadd.f32 %v1322, %v1308
        %v1324 = vadd.f32 %v1323, %v1309
        %v1325 = vadd.f32 %v1324, %v1310
        %v1326 = vadd.f32 %v1325, %v1311
        %v1327 = vadd.f32 %v1326, %v1312
        %v1328 = vadd.f32 %v1327, %v1313
        %v1329 = vadd.f32 %v1328, %v1314
        %v1330 = vadd.f32 %v1329, %v1315
        %v1331 = vadd.f32 %v1330, %v1316
        %v1332 = vrot.slane %v1331, 4
        %v1333 = vadd.f32 %v1331, %v1332
        %v1334 = vrot.slane %v1333, 2
        %v1335 = vadd.f32 %v1333, %v1334
        %v1336 = vrot.slane %v1335, 1
        %v1337 = vadd.f32 %v1335, %v1336
        %v1338 = vmul.f32 %v1337, 0.03125
        %1339 = vst [vmem:[%s150] sm:$0x1] %v1338
        %s1340 = sand.u32 %s76, 1
        %s1341 = scalar_lea.sflag [#allocation3], %s1340
        %s1342 = sand.u32 %s76, 1
        %s1343 = scalar_lea.vmem [#allocation2], %s1342
        // Predicated region
        $region29: #{tpu_custom_call.1} parent=27 // pred_check
          %p1344 = pneg %p86
        $region30: #{tpu_custom_call.1} parent=27 // pred_check_branch
          %1346 = sbr.rel (%p1344) target = $region32
        $region31: #{tpu_custom_call.1} parent=27 // pred_region
          %s1348 = ssub.s32 16, 16
          %1349 = vsyncadd %s1341, %s1348
          %s1350 = smul.addr %s16, 16
          %s1351 = scalar_lea.hbm %s2, %s1350
          %s1353 = sshll.u32 %s1343, 4
          %s1354 = int_to_ptr.vmem [resolvable:$true] %s1353
          %1356 = dma.vmem_to_hbm [thread:$0]  %s1354, 16, %s1351, %s1341
        $region32: #{tpu_custom_call.1} parent=27 // pred_fallthru
          _
      $region28: #{tpu_custom_call.1} parent=5 // pred_fallthru
        _
      %p1357 = scmp.le.s32.totalorder 2, %s11
      // Predicated region
      $region33: #{tpu_custom_call.1} parent=5 // pred_check
        %p1358 = pneg %p1357
      $region34: #{tpu_custom_call.1} parent=5 // pred_check_branch
        %1360 = sbr.rel (%p1358) target = $region36
      $region35: #{tpu_custom_call.1} parent=5 // pred_region
        %s1361 = ssub.s32 %s11, 2
        // Predicated region
        $region37: #{tpu_custom_call.1} parent=35 // pred_check
          %p1362 = pneg %p92
        $region38: #{tpu_custom_call.1} parent=35 // pred_check_branch
          %1364 = sbr.rel (%p1362) target = $region40
        $region39: #{tpu_custom_call.1} parent=35 // pred_region
          %s1365 = sand.u32 %s77, 1
          %s1366 = scalar_lea.sflag [#allocation3], %s1365
          %s1367 = sand.u32 %s77, 1
          %s1368 = scalar_lea.vmem [#allocation2], %s1367
          %1369 = dma.done %s1366, 16
        $region40: #{tpu_custom_call.1} parent=35 // pred_fallthru
          _
      $region36: #{tpu_custom_call.1} parent=5 // pred_fallthru
        _
    $region6: #{tpu_custom_call.1} parent=1 // loop_footer
      %s15 = sadd.s32 1, %s11
    $region7: #{tpu_custom_call.1} parent=1 // loop_footer_branch
      %10 = sbr.rel target = $region3
    $region8: #{tpu_custom_call.1} parent=1 // loop_exit
      _
    %1370 = vsyncpa [#allocation3], 1
    %s1371 = scalar_lea.sflag [#allocation3], 1
    %1372 = vsyncpa %s1371, 1

</llo_original>
